<compile_context>
chip_gen: v7x
topology: tpu7x:2x2x1
jax: 0.10.0
libtpu: 0.0.40
codegen_flags: <defaults>
</compile_context>

<pallas_src>
import functools

import numpy as np
import jax
import jax.numpy as jnp
from jax.experimental import pallas as pl
from jax.experimental.pallas import tpu as pltpu


# ----------------------------------------------------------------------------- kernel


def _fused_kernel(px_ref, py_ref, gx_ref, gy_ref, data_ref,
                  w0_ref, b0_ref, wh_ref, bh_ref, wo_ref, bo_ref,
                  o_ref, feats_ref,
                  *, inv2w2: float, B: int, nt: int, K: int, Gx: int):
    """Fused Gaussian-feature + MLP forward for the whole batch (single invocation).

    px_ref/py_ref: (B*K, 1)   query coords + kernel offsets (host-folded)
    gx_ref/gy_ref: (1, Gx)/(1, Gy) padded coordinate grids
    data_ref:      (nt*Gx, Gy) reflection-padded conditioning data (2-D view)
    feats_ref:     (B, nt*K*K) lane-dense VMEM scratch for the flattened features
    o_ref:         (B, channels)
    """
    # --- separable Gaussian weights, full batch at once (one exp per axis) ---------
    dx = px_ref[...] - gx_ref[...]                       # (B*K, Gx)
    wx = jnp.exp(-(dx * dx) * inv2w2)                    # (B*K, Gx)
    dy = py_ref[...] - gy_ref[...]                       # (B*K, Gy)
    wy = jnp.exp(-(dy * dy) * inv2w2)                    # (B*K, Gy)

    # --- stage 1: one MXU contraction over the padded-y grid for all (t,gx)x(b,ky) --
    a = jax.lax.dot_general(
        data_ref[...], wy,
        dimension_numbers=(((1,), (1,)), ((), ())),
        preferred_element_type=jnp.float32)              # (nt*Gx, B*K)

    # --- stage 2: per (b, t) contraction over the padded-x grid ---------------------
    # Natural output is a (K, K) tile; its rows are scattered lane-dense into the
    # (B, nt*K*K) scratch in torch flatten(1,-1) order: f = t*K*K + kx*K + ky.
    for b in range(B):
        wx_b = wx[b * K:(b + 1) * K, :]                  # (K, Gx)
        for t in range(nt):
            m = a[t * Gx:(t + 1) * Gx, b * K:(b + 1) * K]            # (Gx, K)
            f = jnp.dot(wx_b, m, preferred_element_type=jnp.float32)  # (K, K)
            base = t * K * K
            for kx in range(K):
                feats_ref[b:b + 1, base + kx * K: base + (kx + 1) * K] = f[kx:kx + 1, :]

    # --- MLP: Linear+ReLU x9, final Linear, all on the lane-dense feats -------------
    feats = feats_ref[...]                               # (B, F)
    h = jnp.dot(feats, w0_ref[...], preferred_element_type=jnp.float32) + b0_ref[...]
    h = jnp.maximum(h, 0.0)
    for i in range(wh_ref.shape[0]):                     # static unroll (8 layers)
        h = jnp.dot(h, wh_ref[i], preferred_element_type=jnp.float32) + bh_ref[i]
        h = jnp.maximum(h, 0.0)
    o_ref[...] = jnp.dot(h, wo_ref[...], preferred_element_type=jnp.float32) + bo_ref[...]


# ---------------------------------------------------------------------------- wrapper


def fused_forward(px, py, gx, gy, data2d, w0, b0, wh, bh, wo, bo,
                  *, inv2w2: float, B: int, nt: int, K: int, Gx: int):
    F = nt * K * K
    C = wo.shape[1]
    kern = functools.partial(_fused_kernel, inv2w2=inv2w2, B=B, nt=nt, K=K, Gx=Gx)
    vmem = pl.BlockSpec(memory_space=pltpu.MemorySpace.VMEM)
    return pl.pallas_call(
        kern,
        out_shape=jax.ShapeDtypeStruct((B, C), jnp.float32),
        in_specs=[vmem] * 11,
        out_specs=vmem,
        scratch_shapes=[pltpu.VMEM((B, F), jnp.float32)],
    )(px, py, gx, gy, data2d, w0, b0, wh, bh, wo, bo)


# ----------------------------------------------------------------------------- module


def _linear_init(key, fan_in, fan_out):
    """Deterministic init mimicking torch.nn.Linear defaults (U(-1/sqrt(in), 1/sqrt(in)))."""
    kw, kb = jax.random.split(key)
    bound = 1.0 / float(np.sqrt(fan_in))
    w = jax.random.uniform(kw, (fan_in, fan_out), jnp.float32, -bound, bound)
    b = jax.random.uniform(kb, (fan_out,), jnp.float32, -bound, bound)
    return w, b


class NetworkPallas:
    N_HIDDEN = 8  # number of Linear(H,H)+ReLU blocks in the Sequential

    def __init__(self, q, Nt, x_range, y_range, kernel_xy, kernel_stack, key):
        self.q = q
        self.Nt = Nt
        self.dx = float(np.diff(x_range)[0])
        assert np.all(np.isclose(np.diff(x_range), self.dx)), 'irregular x_range'
        self.dy = float(np.diff(y_range)[0])
        assert np.all(np.isclose(np.diff(y_range), self.dy)), 'irregular y_range'
        assert kernel_xy % 2 == 1, 'Kernel size must be odd!'
        self.kernel = kernel_xy
        half = kernel_xy // 2
        self.channels = 4 + q

        # 1-D separable components of offsets_xy
        self.offx = ((np.arange(kernel_xy) - half) * self.dx).astype(np.float32)
        self.offy = ((np.arange(kernel_xy) - half) * self.dy).astype(np.float32)

        # padded coordinate grids used by GaussianDistanceWeight
        self.gx = np.linspace(x_range[0] - half * self.dx, x_range[-1] + half * self.dx,
                              len(x_range) + kernel_xy - 1).astype(np.float32)
        self.gy = np.linspace(y_range[0] - half * self.dy, y_range[-1] + half * self.dy,
                              len(y_range) + kernel_xy - 1).astype(np.float32)
        self.Gx = self.gx.shape[0]
        self.Gy = self.gy.shape[0]
        self.width = float(min(abs(self.dx), abs(self.dy)) / 1.5)
        self.inv2w2 = float(1.0 / (2.0 * self.width ** 2))

        # RK buffers (unused in forward): zero placeholders
        self.rk_A = jnp.zeros((q, q), jnp.float32)
        self.rk_b = jnp.zeros((q,), jnp.float32)
        self.rk_c = jnp.zeros((q,), jnp.float32)

        # MLP parameters
        H = self.channels * kernel_stack
        F = Nt * kernel_xy ** 2
        keys = jax.random.split(key, 2 + self.N_HIDDEN)
        w0, b0 = _linear_init(keys[0], F, H)
        self.w0, self.b0 = w0, b0.reshape(1, H)
        whs, bhs = [], []
        for i in range(self.N_HIDDEN):
            w, b = _linear_init(keys[1 + i], H, H)
            whs.append(w)
            bhs.append(b.reshape(1, H))
        self.wh = jnp.stack(whs)                       # (8, H, H)
        self.bh = jnp.stack(bhs)                       # (8, 1, H)
        wo, bo = _linear_init(keys[-1], H, self.channels)
        self.wo, self.bo = wo, bo.reshape(1, self.channels)

        self.data = None
        self.data2d = None

        # constant operands for the kernel
        self._gx_row = jnp.asarray(self.gx).reshape(1, -1)
        self._gy_row = jnp.asarray(self.gy).reshape(1, -1)
        self._offx = jnp.asarray(self.offx)
        self._offy = jnp.asarray(self.offy)

    def data_(self, u):
        """Load conditioning data (Nt, Nx, Ny) or (1, Nt, Nx, Ny) and reflection-pad it."""
        u = jnp.asarray(u, jnp.float32)
        if u.ndim == 4:
            assert u.shape[0] == 1, 'only a single data batch is supported here'
            u = u[0]
        elif u.ndim != 3:
            raise ValueError('Received data of an incompatible shape.')
        half = self.kernel // 2
        # same semantics as nn.ReflectionPad2d(kernel//2)
        self.data = jnp.pad(u, ((0, 0), (half, half), (half, half)), mode='reflect')
        # 2-D (Nt*Gx, Gy) view for the single stage-1 MXU contraction in the kernel
        self.data2d = self.data.reshape(self.Nt * self.Gx, self.Gy)

    def forward(self, x, y):
        x = jnp.asarray(x, jnp.float32)
        y = jnp.asarray(y, jnp.float32)
        B = x.shape[0]
        K = self.kernel
        # host-folded query + kernel-offset columns (B*K, 1), C-order index = b*K + k
        px_col = (x[:, None] + self._offx[None, :]).reshape(B * K, 1)
        py_col = (y[:, None] + self._offy[None, :]).reshape(B * K, 1)
        return fused_forward(
            px_col, py_col, self._gx_row, self._gy_row, self.data2d,
            self.w0, self.b0, self.wh, self.bh, self.wo, self.bo,
            inv2w2=self.inv2w2, B=B, nt=self.Nt, K=K, Gx=self.Gx)


# ---------------------------------------------------------------- pure-JAX reference


def forward_reference(net, x, y):
    offx = jnp.asarray(net.offx)
    offy = jnp.asarray(net.offy)
    gx = jnp.asarray(net.gx)
    gy = jnp.asarray(net.gy)
    px = x[:, None] + offx[None, :]                      # (B, K)
    py = y[:, None] + offy[None, :]                      # (B, K)
    d2 = ((px[:, :, None, None, None] - gx[None, None, None, :, None]) ** 2
          + (py[:, None, :, None, None] - gy[None, None, None, None, :]) ** 2)
    w = jnp.exp(-d2 / (2.0 * net.width ** 2))            # (B, K, K, Gx, Gy)
    r = w[:, None] * net.data[None, :, None, None, :, :]  # (B, Nt, K, K, Gx, Gy)
    r = r.sum(axis=(-1, -2)).reshape(x.shape[0], -1)
    h = jnp.maximum(r @ net.w0 + net.b0, 0.0)
    for i in range(net.wh.shape[0]):
        h = jnp.maximum(h @ net.wh[i] + net.bh[i], 0.0)
    return h @ net.wo + net.bo


# ---------------------------------------------------------------------------------- main


if __name__ == "__main__":
    q, Nt = 4, 2
    Nx = Ny = 16
    kernel_xy, kernel_stack = 3, 4
    B = 4

    x_range = np.linspace(0.0, 1.0, Nx).astype(np.float32)
    y_range = np.linspace(0.0, 1.0, Ny).astype(np.float32)

    key = jax.random.PRNGKey(0)
    k_net, k_u, k_x, k_y = jax.random.split(key, 4)

    net = NetworkPallas(q, Nt, x_range, y_range, kernel_xy, kernel_stack, k_net)
    u = jax.random.normal(k_u, (Nt, Nx, Ny), jnp.float32)
    net.data_(u)

    x = jax.random.uniform(k_x, (B,), jnp.float32, float(x_range[0]), float(x_range[-1]))
    y = jax.random.uniform(k_y, (B,), jnp.float32, float(y_range[0]), float(y_range[-1]))

    out = jax.block_until_ready(net.forward(x, y))
    assert out.shape == (B, 4 + q)

    ref = jax.block_until_ready(forward_reference(net, x, y))
    np.testing.assert_allclose(np.asarray(out), np.asarray(ref), rtol=1e-3, atol=1e-3)

    print("KERNEL_OK")
</pallas_src>

<mosaic_0001>
module attributes {stable_mosaic.version = 11 : i64} {
  func.func @_fused_kernel(%arg0: memref<12x1xf32, #tpu.memory_space<vmem>>, %arg1: memref<12x1xf32, #tpu.memory_space<vmem>>, %arg2: memref<1x18xf32, #tpu.memory_space<vmem>>, %arg3: memref<1x18xf32, #tpu.memory_space<vmem>>, %arg4: memref<36x18xf32, #tpu.memory_space<vmem>>, %arg5: memref<18x32xf32, #tpu.memory_space<vmem>>, %arg6: memref<1x32xf32, #tpu.memory_space<vmem>>, %arg7: memref<8x32x32xf32, #tpu.memory_space<vmem>>, %arg8: memref<8x1x32xf32, #tpu.memory_space<vmem>>, %arg9: memref<32x8xf32, #tpu.memory_space<vmem>>, %arg10: memref<1x8xf32, #tpu.memory_space<vmem>>, %arg11: memref<4x8xf32, #tpu.memory_space<vmem>>, %arg12: memref<4x18xf32, #tpu.memory_space<vmem>>) attributes {dimension_semantics = [], scalar_prefetch = 0 : i64, scratch_operands = 1 : i64, tpu.core_type = #tpu.core_type<tc>} {
    %c0 = arith.constant 0 : index
    %c0_0 = arith.constant 0 : index
    %0 = vector.load %arg0[%c0, %c0_0] : memref<12x1xf32, #tpu.memory_space<vmem>>, vector<12x1xf32>
    %c0_1 = arith.constant 0 : index
    %c0_2 = arith.constant 0 : index
    %1 = vector.load %arg2[%c0_1, %c0_2] : memref<1x18xf32, #tpu.memory_space<vmem>>, vector<1x18xf32>
    %2 = vector.broadcast %0 : vector<12x1xf32> to vector<12x18xf32>
    %3 = vector.broadcast %1 : vector<1x18xf32> to vector<12x18xf32>
    %4 = arith.subf %2, %3 : vector<12x18xf32>
    %5 = arith.mulf %4, %4 : vector<12x18xf32>
    %cst = arith.constant 0.000000e+00 : f32
    %6 = vector.broadcast %cst : f32 to vector<12x18xf32>
    %7 = arith.subf %6, %5 : vector<12x18xf32>
    %cst_3 = arith.constant 253.124969 : f32
    %8 = vector.broadcast %cst_3 : f32 to vector<12x18xf32>
    %9 = arith.mulf %7, %8 : vector<12x18xf32>
    %10 = math.exp %9 : vector<12x18xf32>
    %c0_4 = arith.constant 0 : index
    %c0_5 = arith.constant 0 : index
    %11 = vector.load %arg1[%c0_4, %c0_5] : memref<12x1xf32, #tpu.memory_space<vmem>>, vector<12x1xf32>
    %c0_6 = arith.constant 0 : index
    %c0_7 = arith.constant 0 : index
    %12 = vector.load %arg3[%c0_6, %c0_7] : memref<1x18xf32, #tpu.memory_space<vmem>>, vector<1x18xf32>
    %13 = vector.broadcast %11 : vector<12x1xf32> to vector<12x18xf32>
    %14 = vector.broadcast %12 : vector<1x18xf32> to vector<12x18xf32>
    %15 = arith.subf %13, %14 : vector<12x18xf32>
    %16 = arith.mulf %15, %15 : vector<12x18xf32>
    %cst_8 = arith.constant 0.000000e+00 : f32
    %17 = vector.broadcast %cst_8 : f32 to vector<12x18xf32>
    %18 = arith.subf %17, %16 : vector<12x18xf32>
    %cst_9 = arith.constant 253.124969 : f32
    %19 = vector.broadcast %cst_9 : f32 to vector<12x18xf32>
    %20 = arith.mulf %18, %19 : vector<12x18xf32>
    %21 = math.exp %20 : vector<12x18xf32>
    %c0_10 = arith.constant 0 : index
    %c0_11 = arith.constant 0 : index
    %22 = vector.load %arg4[%c0_10, %c0_11] : memref<36x18xf32, #tpu.memory_space<vmem>>, vector<36x18xf32>
    %cst_12 = arith.constant dense<0.000000e+00> : vector<36x12xf32>
    %23 = tpu.matmul %22, %21, %cst_12 {dimension_numbers = #tpu.dot_dimension_numbers<[1], [1], [0], [0], [0, 0, 1, 0], [], []>} : vector<36x18xf32>, vector<12x18xf32>, vector<36x12xf32> -> vector<36x12xf32>
    %24 = vector.extract_strided_slice %10 {offsets = [0, 0], sizes = [3, 18], strides = [1, 1]} : vector<12x18xf32> to vector<3x18xf32>
    %25 = vector.extract_strided_slice %23 {offsets = [0, 0], sizes = [18, 3], strides = [1, 1]} : vector<36x12xf32> to vector<18x3xf32>
    %cst_13 = arith.constant dense<0.000000e+00> : vector<3x3xf32>
    %26 = tpu.matmul %24, %25, %cst_13 {dimension_numbers = #tpu.dot_dimension_numbers<[1], [0], [0], [1], [0, 0, 1, 1], [], []>} : vector<3x18xf32>, vector<18x3xf32>, vector<3x3xf32> -> vector<3x3xf32>
    %27 = vector.extract_strided_slice %26 {offsets = [0, 0], sizes = [1, 3], strides = [1, 1]} : vector<3x3xf32> to vector<1x3xf32>
    %c0_14 = arith.constant 0 : index
    %c0_15 = arith.constant 0 : index
    %28 = vector.load %arg12[%c0_14, %c0_15] : memref<4x18xf32, #tpu.memory_space<vmem>>, vector<1x3xf32>
    tpu.vector_store %arg12[%c0_14, %c0_15], %27 {strides = array<i32>} : memref<4x18xf32, #tpu.memory_space<vmem>>, vector<1x3xf32>,
    %29 = vector.extract_strided_slice %26 {offsets = [1, 0], sizes = [1, 3], strides = [1, 1]} : vector<3x3xf32> to vector<1x3xf32>
    %c0_16 = arith.constant 0 : index
    %c3 = arith.constant 3 : index
    %30 = vector.load %arg12[%c0_16, %c3] : memref<4x18xf32, #tpu.memory_space<vmem>>, vector<1x3xf32>
    tpu.vector_store %arg12[%c0_16, %c3], %29 {strides = array<i32>} : memref<4x18xf32, #tpu.memory_space<vmem>>, vector<1x3xf32>,
    %31 = vector.extract_strided_slice %26 {offsets = [2, 0], sizes = [1, 3], strides = [1, 1]} : vector<3x3xf32> to vector<1x3xf32>
    %c0_17 = arith.constant 0 : index
    %c6 = arith.constant 6 : index
    %32 = vector.load %arg12[%c0_17, %c6] : memref<4x18xf32, #tpu.memory_space<vmem>>, vector<1x3xf32>
    tpu.vector_store %arg12[%c0_17, %c6], %31 {strides = array<i32>} : memref<4x18xf32, #tpu.memory_space<vmem>>, vector<1x3xf32>,
    %33 = vector.extract_strided_slice %23 {offsets = [18, 0], sizes = [18, 3], strides = [1, 1]} : vector<36x12xf32> to vector<18x3xf32>
    %cst_18 = arith.constant dense<0.000000e+00> : vector<3x3xf32>
    %34 = tpu.matmul %24, %33, %cst_18 {dimension_numbers = #tpu.dot_dimension_numbers<[1], [0], [0], [1], [0, 0, 1, 1], [], []>} : vector<3x18xf32>, vector<18x3xf32>, vector<3x3xf32> -> vector<3x3xf32>
    %35 = vector.extract_strided_slice %34 {offsets = [0, 0], sizes = [1, 3], strides = [1, 1]} : vector<3x3xf32> to vector<1x3xf32>
    %c0_19 = arith.constant 0 : index
    %c9 = arith.constant 9 : index
    %36 = vector.load %arg12[%c0_19, %c9] : memref<4x18xf32, #tpu.memory_space<vmem>>, vector<1x3xf32>
    tpu.vector_store %arg12[%c0_19, %c9], %35 {strides = array<i32>} : memref<4x18xf32, #tpu.memory_space<vmem>>, vector<1x3xf32>,
    %37 = vector.extract_strided_slice %34 {offsets = [1, 0], sizes = [1, 3], strides = [1, 1]} : vector<3x3xf32> to vector<1x3xf32>
    %c0_20 = arith.constant 0 : index
    %c12 = arith.constant 12 : index
    %38 = vector.load %arg12[%c0_20, %c12] : memref<4x18xf32, #tpu.memory_space<vmem>>, vector<1x3xf32>
    tpu.vector_store %arg12[%c0_20, %c12], %37 {strides = array<i32>} : memref<4x18xf32, #tpu.memory_space<vmem>>, vector<1x3xf32>,
    %39 = vector.extract_strided_slice %34 {offsets = [2, 0], sizes = [1, 3], strides = [1, 1]} : vector<3x3xf32> to vector<1x3xf32>
    %c0_21 = arith.constant 0 : index
    %c15 = arith.constant 15 : index
    %40 = vector.load %arg12[%c0_21, %c15] : memref<4x18xf32, #tpu.memory_space<vmem>>, vector<1x3xf32>
    tpu.vector_store %arg12[%c0_21, %c15], %39 {strides = array<i32>} : memref<4x18xf32, #tpu.memory_space<vmem>>, vector<1x3xf32>,
    %41 = vector.extract_strided_slice %10 {offsets = [3, 0], sizes = [3, 18], strides = [1, 1]} : vector<12x18xf32> to vector<3x18xf32>
    %42 = vector.extract_strided_slice %23 {offsets = [0, 3], sizes = [18, 3], strides = [1, 1]} : vector<36x12xf32> to vector<18x3xf32>
    %cst_22 = arith.constant dense<0.000000e+00> : vector<3x3xf32>
    %43 = tpu.matmul %41, %42, %cst_22 {dimension_numbers = #tpu.dot_dimension_numbers<[1], [0], [0], [1], [0, 0, 1, 1], [], []>} : vector<3x18xf32>, vector<18x3xf32>, vector<3x3xf32> -> vector<3x3xf32>
    %44 = vector.extract_strided_slice %43 {offsets = [0, 0], sizes = [1, 3], strides = [1, 1]} : vector<3x3xf32> to vector<1x3xf32>
    %c1 = arith.constant 1 : index
    %c0_23 = arith.constant 0 : index
    %45 = vector.load %arg12[%c1, %c0_23] : memref<4x18xf32, #tpu.memory_space<vmem>>, vector<1x3xf32>
    tpu.vector_store %arg12[%c1, %c0_23], %44 {strides = array<i32>} : memref<4x18xf32, #tpu.memory_space<vmem>>, vector<1x3xf32>,
    %46 = vector.extract_strided_slice %43 {offsets = [1, 0], sizes = [1, 3], strides = [1, 1]} : vector<3x3xf32> to vector<1x3xf32>
    %c1_24 = arith.constant 1 : index
    %c3_25 = arith.constant 3 : index
    %47 = vector.load %arg12[%c1_24, %c3_25] : memref<4x18xf32, #tpu.memory_space<vmem>>, vector<1x3xf32>
    tpu.vector_store %arg12[%c1_24, %c3_25], %46 {strides = array<i32>} : memref<4x18xf32, #tpu.memory_space<vmem>>, vector<1x3xf32>,
    %48 = vector.extract_strided_slice %43 {offsets = [2, 0], sizes = [1, 3], strides = [1, 1]} : vector<3x3xf32> to vector<1x3xf32>
    %c1_26 = arith.constant 1 : index
    %c6_27 = arith.constant 6 : index
    %49 = vector.load %arg12[%c1_26, %c6_27] : memref<4x18xf32, #tpu.memory_space<vmem>>, vector<1x3xf32>
    tpu.vector_store %arg12[%c1_26, %c6_27], %48 {strides = array<i32>} : memref<4x18xf32, #tpu.memory_space<vmem>>, vector<1x3xf32>,
    %50 = vector.extract_strided_slice %23 {offsets = [18, 3], sizes = [18, 3], strides = [1, 1]} : vector<36x12xf32> to vector<18x3xf32>
    %cst_28 = arith.constant dense<0.000000e+00> : vector<3x3xf32>
    %51 = tpu.matmul %41, %50, %cst_28 {dimension_numbers = #tpu.dot_dimension_numbers<[1], [0], [0], [1], [0, 0, 1, 1], [], []>} : vector<3x18xf32>, vector<18x3xf32>, vector<3x3xf32> -> vector<3x3xf32>
    %52 = vector.extract_strided_slice %51 {offsets = [0, 0], sizes = [1, 3], strides = [1, 1]} : vector<3x3xf32> to vector<1x3xf32>
    %c1_29 = arith.constant 1 : index
    %c9_30 = arith.constant 9 : index
    %53 = vector.load %arg12[%c1_29, %c9_30] : memref<4x18xf32, #tpu.memory_space<vmem>>, vector<1x3xf32>
    tpu.vector_store %arg12[%c1_29, %c9_30], %52 {strides = array<i32>} : memref<4x18xf32, #tpu.memory_space<vmem>>, vector<1x3xf32>,
    %54 = vector.extract_strided_slice %51 {offsets = [1, 0], sizes = [1, 3], strides = [1, 1]} : vector<3x3xf32> to vector<1x3xf32>
    %c1_31 = arith.constant 1 : index
    %c12_32 = arith.constant 12 : index
    %55 = vector.load %arg12[%c1_31, %c12_32] : memref<4x18xf32, #tpu.memory_space<vmem>>, vector<1x3xf32>
    tpu.vector_store %arg12[%c1_31, %c12_32], %54 {strides = array<i32>} : memref<4x18xf32, #tpu.memory_space<vmem>>, vector<1x3xf32>,
    %56 = vector.extract_strided_slice %51 {offsets = [2, 0], sizes = [1, 3], strides = [1, 1]} : vector<3x3xf32> to vector<1x3xf32>
    %c1_33 = arith.constant 1 : index
    %c15_34 = arith.constant 15 : index
    %57 = vector.load %arg12[%c1_33, %c15_34] : memref<4x18xf32, #tpu.memory_space<vmem>>, vector<1x3xf32>
    tpu.vector_store %arg12[%c1_33, %c15_34], %56 {strides = array<i32>} : memref<4x18xf32, #tpu.memory_space<vmem>>, vector<1x3xf32>,
    %58 = vector.extract_strided_slice %10 {offsets = [6, 0], sizes = [3, 18], strides = [1, 1]} : vector<12x18xf32> to vector<3x18xf32>
    %59 = vector.extract_strided_slice %23 {offsets = [0, 6], sizes = [18, 3], strides = [1, 1]} : vector<36x12xf32> to vector<18x3xf32>
    %cst_35 = arith.constant dense<0.000000e+00> : vector<3x3xf32>
    %60 = tpu.matmul %58, %59, %cst_35 {dimension_numbers = #tpu.dot_dimension_numbers<[1], [0], [0], [1], [0, 0, 1, 1], [], []>} : vector<3x18xf32>, vector<18x3xf32>, vector<3x3xf32> -> vector<3x3xf32>
    %61 = vector.extract_strided_slice %60 {offsets = [0, 0], sizes = [1, 3], strides = [1, 1]} : vector<3x3xf32> to vector<1x3xf32>
    %c2 = arith.constant 2 : index
    %c0_36 = arith.constant 0 : index
    %62 = vector.load %arg12[%c2, %c0_36] : memref<4x18xf32, #tpu.memory_space<vmem>>, vector<1x3xf32>
    tpu.vector_store %arg12[%c2, %c0_36], %61 {strides = array<i32>} : memref<4x18xf32, #tpu.memory_space<vmem>>, vector<1x3xf32>,
    %63 = vector.extract_strided_slice %60 {offsets = [1, 0], sizes = [1, 3], strides = [1, 1]} : vector<3x3xf32> to vector<1x3xf32>
    %c2_37 = arith.constant 2 : index
    %c3_38 = arith.constant 3 : index
    %64 = vector.load %arg12[%c2_37, %c3_38] : memref<4x18xf32, #tpu.memory_space<vmem>>, vector<1x3xf32>
    tpu.vector_store %arg12[%c2_37, %c3_38], %63 {strides = array<i32>} : memref<4x18xf32, #tpu.memory_space<vmem>>, vector<1x3xf32>,
    %65 = vector.extract_strided_slice %60 {offsets = [2, 0], sizes = [1, 3], strides = [1, 1]} : vector<3x3xf32> to vector<1x3xf32>
    %c2_39 = arith.constant 2 : index
    %c6_40 = arith.constant 6 : index
    %66 = vector.load %arg12[%c2_39, %c6_40] : memref<4x18xf32, #tpu.memory_space<vmem>>, vector<1x3xf32>
    tpu.vector_store %arg12[%c2_39, %c6_40], %65 {strides = array<i32>} : memref<4x18xf32, #tpu.memory_space<vmem>>, vector<1x3xf32>,
    %67 = vector.extract_strided_slice %23 {offsets = [18, 6], sizes = [18, 3], strides = [1, 1]} : vector<36x12xf32> to vector<18x3xf32>
    %cst_41 = arith.constant dense<0.000000e+00> : vector<3x3xf32>
    %68 = tpu.matmul %58, %67, %cst_41 {dimension_numbers = #tpu.dot_dimension_numbers<[1], [0], [0], [1], [0, 0, 1, 1], [], []>} : vector<3x18xf32>, vector<18x3xf32>, vector<3x3xf32> -> vector<3x3xf32>
    %69 = vector.extract_strided_slice %68 {offsets = [0, 0], sizes = [1, 3], strides = [1, 1]} : vector<3x3xf32> to vector<1x3xf32>
    %c2_42 = arith.constant 2 : index
    %c9_43 = arith.constant 9 : index
    %70 = vector.load %arg12[%c2_42, %c9_43] : memref<4x18xf32, #tpu.memory_space<vmem>>, vector<1x3xf32>
    tpu.vector_store %arg12[%c2_42, %c9_43], %69 {strides = array<i32>} : memref<4x18xf32, #tpu.memory_space<vmem>>, vector<1x3xf32>,
    %71 = vector.extract_strided_slice %68 {offsets = [1, 0], sizes = [1, 3], strides = [1, 1]} : vector<3x3xf32> to vector<1x3xf32>
    %c2_44 = arith.constant 2 : index
    %c12_45 = arith.constant 12 : index
    %72 = vector.load %arg12[%c2_44, %c12_45] : memref<4x18xf32, #tpu.memory_space<vmem>>, vector<1x3xf32>
    tpu.vector_store %arg12[%c2_44, %c12_45], %71 {strides = array<i32>} : memref<4x18xf32, #tpu.memory_space<vmem>>, vector<1x3xf32>,
    %73 = vector.extract_strided_slice %68 {offsets = [2, 0], sizes = [1, 3], strides = [1, 1]} : vector<3x3xf32> to vector<1x3xf32>
    %c2_46 = arith.constant 2 : index
    %c15_47 = arith.constant 15 : index
    %74 = vector.load %arg12[%c2_46, %c15_47] : memref<4x18xf32, #tpu.memory_space<vmem>>, vector<1x3xf32>
    tpu.vector_store %arg12[%c2_46, %c15_47], %73 {strides = array<i32>} : memref<4x18xf32, #tpu.memory_space<vmem>>, vector<1x3xf32>,
    %75 = vector.extract_strided_slice %10 {offsets = [9, 0], sizes = [3, 18], strides = [1, 1]} : vector<12x18xf32> to vector<3x18xf32>
    %76 = vector.extract_strided_slice %23 {offsets = [0, 9], sizes = [18, 3], strides = [1, 1]} : vector<36x12xf32> to vector<18x3xf32>
    %cst_48 = arith.constant dense<0.000000e+00> : vector<3x3xf32>
    %77 = tpu.matmul %75, %76, %cst_48 {dimension_numbers = #tpu.dot_dimension_numbers<[1], [0], [0], [1], [0, 0, 1, 1], [], []>} : vector<3x18xf32>, vector<18x3xf32>, vector<3x3xf32> -> vector<3x3xf32>
    %78 = vector.extract_strided_slice %77 {offsets = [0, 0], sizes = [1, 3], strides = [1, 1]} : vector<3x3xf32> to vector<1x3xf32>
    %c3_49 = arith.constant 3 : index
    %c0_50 = arith.constant 0 : index
    %79 = vector.load %arg12[%c3_49, %c0_50] : memref<4x18xf32, #tpu.memory_space<vmem>>, vector<1x3xf32>
    tpu.vector_store %arg12[%c3_49, %c0_50], %78 {strides = array<i32>} : memref<4x18xf32, #tpu.memory_space<vmem>>, vector<1x3xf32>,
    %80 = vector.extract_strided_slice %77 {offsets = [1, 0], sizes = [1, 3], strides = [1, 1]} : vector<3x3xf32> to vector<1x3xf32>
    %c3_51 = arith.constant 3 : index
    %c3_52 = arith.constant 3 : index
    %81 = vector.load %arg12[%c3_51, %c3_52] : memref<4x18xf32, #tpu.memory_space<vmem>>, vector<1x3xf32>
    tpu.vector_store %arg12[%c3_51, %c3_52], %80 {strides = array<i32>} : memref<4x18xf32, #tpu.memory_space<vmem>>, vector<1x3xf32>,
    %82 = vector.extract_strided_slice %77 {offsets = [2, 0], sizes = [1, 3], strides = [1, 1]} : vector<3x3xf32> to vector<1x3xf32>
    %c3_53 = arith.constant 3 : index
    %c6_54 = arith.constant 6 : index
    %83 = vector.load %arg12[%c3_53, %c6_54] : memref<4x18xf32, #tpu.memory_space<vmem>>, vector<1x3xf32>
    tpu.vector_store %arg12[%c3_53, %c6_54], %82 {strides = array<i32>} : memref<4x18xf32, #tpu.memory_space<vmem>>, vector<1x3xf32>,
    %84 = vector.extract_strided_slice %23 {offsets = [18, 9], sizes = [18, 3], strides = [1, 1]} : vector<36x12xf32> to vector<18x3xf32>
    %cst_55 = arith.constant dense<0.000000e+00> : vector<3x3xf32>
    %85 = tpu.matmul %75, %84, %cst_55 {dimension_numbers = #tpu.dot_dimension_numbers<[1], [0], [0], [1], [0, 0, 1, 1], [], []>} : vector<3x18xf32>, vector<18x3xf32>, vector<3x3xf32> -> vector<3x3xf32>
    %86 = vector.extract_strided_slice %85 {offsets = [0, 0], sizes = [1, 3], strides = [1, 1]} : vector<3x3xf32> to vector<1x3xf32>
    %c3_56 = arith.constant 3 : index
    %c9_57 = arith.constant 9 : index
    %87 = vector.load %arg12[%c3_56, %c9_57] : memref<4x18xf32, #tpu.memory_space<vmem>>, vector<1x3xf32>
    tpu.vector_store %arg12[%c3_56, %c9_57], %86 {strides = array<i32>} : memref<4x18xf32, #tpu.memory_space<vmem>>, vector<1x3xf32>,
    %88 = vector.extract_strided_slice %85 {offsets = [1, 0], sizes = [1, 3], strides = [1, 1]} : vector<3x3xf32> to vector<1x3xf32>
    %c3_58 = arith.constant 3 : index
    %c12_59 = arith.constant 12 : index
    %89 = vector.load %arg12[%c3_58, %c12_59] : memref<4x18xf32, #tpu.memory_space<vmem>>, vector<1x3xf32>
    tpu.vector_store %arg12[%c3_58, %c12_59], %88 {strides = array<i32>} : memref<4x18xf32, #tpu.memory_space<vmem>>, vector<1x3xf32>,
    %90 = vector.extract_strided_slice %85 {offsets = [2, 0], sizes = [1, 3], strides = [1, 1]} : vector<3x3xf32> to vector<1x3xf32>
    %c3_60 = arith.constant 3 : index
    %c15_61 = arith.constant 15 : index
    %91 = vector.load %arg12[%c3_60, %c15_61] : memref<4x18xf32, #tpu.memory_space<vmem>>, vector<1x3xf32>
    tpu.vector_store %arg12[%c3_60, %c15_61], %90 {strides = array<i32>} : memref<4x18xf32, #tpu.memory_space<vmem>>, vector<1x3xf32>,
    %c0_62 = arith.constant 0 : index
    %c0_63 = arith.constant 0 : index
    %92 = vector.load %arg12[%c0_62, %c0_63] : memref<4x18xf32, #tpu.memory_space<vmem>>, vector<4x18xf32>
    %c0_64 = arith.constant 0 : index
    %c0_65 = arith.constant 0 : index
    %93 = vector.load %arg5[%c0_64, %c0_65] : memref<18x32xf32, #tpu.memory_space<vmem>>, vector<18x32xf32>
    %cst_66 = arith.constant dense<0.000000e+00> : vector<4x32xf32>
    %94 = tpu.matmul %92, %93, %cst_66 {dimension_numbers = #tpu.dot_dimension_numbers<[1], [0], [0], [1], [0, 0, 1, 1], [], []>} : vector<4x18xf32>, vector<18x32xf32>, vector<4x32xf32> -> vector<4x32xf32>
    %c0_67 = arith.constant 0 : index
    %c0_68 = arith.constant 0 : index
    %95 = vector.load %arg6[%c0_67, %c0_68] : memref<1x32xf32, #tpu.memory_space<vmem>>, vector<1x32xf32>
    %96 = vector.broadcast %95 : vector<1x32xf32> to vector<4x32xf32>
    %97 = arith.addf %94, %96 : vector<4x32xf32>
    %cst_69 = arith.constant 0.000000e+00 : f32
    %98 = vector.broadcast %cst_69 : f32 to vector<4x32xf32>
    %99 = arith.maximumf %97, %98 : vector<4x32xf32>
    %c0_70 = arith.constant 0 : index
    %c0_71 = arith.constant 0 : index
    %c0_72 = arith.constant 0 : index
    %100 = vector.load %arg7[%c0_70, %c0_71, %c0_72] : memref<8x32x32xf32, #tpu.memory_space<vmem>>, vector<1x32x32xf32>
    %101 = vector.shape_cast %100 : vector<1x32x32xf32> to vector<32x32xf32>
    %cst_73 = arith.constant dense<0.000000e+00> : vector<4x32xf32>
    %102 = tpu.matmul %99, %101, %cst_73 {dimension_numbers = #tpu.dot_dimension_numbers<[1], [0], [0], [1], [0, 0, 1, 1], [], []>} : vector<4x32xf32>, vector<32x32xf32>, vector<4x32xf32> -> vector<4x32xf32>
    %c0_74 = arith.constant 0 : index
    %c0_75 = arith.constant 0 : index
    %c0_76 = arith.constant 0 : index
    %103 = vector.load %arg8[%c0_74, %c0_75, %c0_76] : memref<8x1x32xf32, #tpu.memory_space<vmem>>, vector<1x1x32xf32>
    %104 = vector.shape_cast %103 : vector<1x1x32xf32> to vector<1x32xf32>
    %105 = vector.broadcast %104 : vector<1x32xf32> to vector<4x32xf32>
    %106 = arith.addf %102, %105 : vector<4x32xf32>
    %cst_77 = arith.constant 0.000000e+00 : f32
    %107 = vector.broadcast %cst_77 : f32 to vector<4x32xf32>
    %108 = arith.maximumf %106, %107 : vector<4x32xf32>
    %c1_78 = arith.constant 1 : index
    %c0_79 = arith.constant 0 : index
    %c0_80 = arith.constant 0 : index
    %109 = vector.load %arg7[%c1_78, %c0_79, %c0_80] : memref<8x32x32xf32, #tpu.memory_space<vmem>>, vector<1x32x32xf32>
    %110 = vector.shape_cast %109 : vector<1x32x32xf32> to vector<32x32xf32>
    %cst_81 = arith.constant dense<0.000000e+00> : vector<4x32xf32>
    %111 = tpu.matmul %108, %110, %cst_81 {dimension_numbers = #tpu.dot_dimension_numbers<[1], [0], [0], [1], [0, 0, 1, 1], [], []>} : vector<4x32xf32>, vector<32x32xf32>, vector<4x32xf32> -> vector<4x32xf32>
    %c1_82 = arith.constant 1 : index
    %c0_83 = arith.constant 0 : index
    %c0_84 = arith.constant 0 : index
    %112 = vector.load %arg8[%c1_82, %c0_83, %c0_84] : memref<8x1x32xf32, #tpu.memory_space<vmem>>, vector<1x1x32xf32>
    %113 = vector.shape_cast %112 : vector<1x1x32xf32> to vector<1x32xf32>
    %114 = vector.broadcast %113 : vector<1x32xf32> to vector<4x32xf32>
    %115 = arith.addf %111, %114 : vector<4x32xf32>
    %cst_85 = arith.constant 0.000000e+00 : f32
    %116 = vector.broadcast %cst_85 : f32 to vector<4x32xf32>
    %117 = arith.maximumf %115, %116 : vector<4x32xf32>
    %c2_86 = arith.constant 2 : index
    %c0_87 = arith.constant 0 : index
    %c0_88 = arith.constant 0 : index
    %118 = vector.load %arg7[%c2_86, %c0_87, %c0_88] : memref<8x32x32xf32, #tpu.memory_space<vmem>>, vector<1x32x32xf32>
    %119 = vector.shape_cast %118 : vector<1x32x32xf32> to vector<32x32xf32>
    %cst_89 = arith.constant dense<0.000000e+00> : vector<4x32xf32>
    %120 = tpu.matmul %117, %119, %cst_89 {dimension_numbers = #tpu.dot_dimension_numbers<[1], [0], [0], [1], [0, 0, 1, 1], [], []>} : vector<4x32xf32>, vector<32x32xf32>, vector<4x32xf32> -> vector<4x32xf32>
    %c2_90 = arith.constant 2 : index
    %c0_91 = arith.constant 0 : index
    %c0_92 = arith.constant 0 : index
    %121 = vector.load %arg8[%c2_90, %c0_91, %c0_92] : memref<8x1x32xf32, #tpu.memory_space<vmem>>, vector<1x1x32xf32>
    %122 = vector.shape_cast %121 : vector<1x1x32xf32> to vector<1x32xf32>
    %123 = vector.broadcast %122 : vector<1x32xf32> to vector<4x32xf32>
    %124 = arith.addf %120, %123 : vector<4x32xf32>
    %cst_93 = arith.constant 0.000000e+00 : f32
    %125 = vector.broadcast %cst_93 : f32 to vector<4x32xf32>
    %126 = arith.maximumf %124, %125 : vector<4x32xf32>
    %c3_94 = arith.constant 3 : index
    %c0_95 = arith.constant 0 : index
    %c0_96 = arith.constant 0 : index
    %127 = vector.load %arg7[%c3_94, %c0_95, %c0_96] : memref<8x32x32xf32, #tpu.memory_space<vmem>>, vector<1x32x32xf32>
    %128 = vector.shape_cast %127 : vector<1x32x32xf32> to vector<32x32xf32>
    %cst_97 = arith.constant dense<0.000000e+00> : vector<4x32xf32>
    %129 = tpu.matmul %126, %128, %cst_97 {dimension_numbers = #tpu.dot_dimension_numbers<[1], [0], [0], [1], [0, 0, 1, 1], [], []>} : vector<4x32xf32>, vector<32x32xf32>, vector<4x32xf32> -> vector<4x32xf32>
    %c3_98 = arith.constant 3 : index
    %c0_99 = arith.constant 0 : index
    %c0_100 = arith.constant 0 : index
    %130 = vector.load %arg8[%c3_98, %c0_99, %c0_100] : memref<8x1x32xf32, #tpu.memory_space<vmem>>, vector<1x1x32xf32>
    %131 = vector.shape_cast %130 : vector<1x1x32xf32> to vector<1x32xf32>
    %132 = vector.broadcast %131 : vector<1x32xf32> to vector<4x32xf32>
    %133 = arith.addf %129, %132 : vector<4x32xf32>
    %cst_101 = arith.constant 0.000000e+00 : f32
    %134 = vector.broadcast %cst_101 : f32 to vector<4x32xf32>
    %135 = arith.maximumf %133, %134 : vector<4x32xf32>
    %c4 = arith.constant 4 : index
    %c0_102 = arith.constant 0 : index
    %c0_103 = arith.constant 0 : index
    %136 = vector.load %arg7[%c4, %c0_102, %c0_103] : memref<8x32x32xf32, #tpu.memory_space<vmem>>, vector<1x32x32xf32>
    %137 = vector.shape_cast %136 : vector<1x32x32xf32> to vector<32x32xf32>
    %cst_104 = arith.constant dense<0.000000e+00> : vector<4x32xf32>
    %138 = tpu.matmul %135, %137, %cst_104 {dimension_numbers = #tpu.dot_dimension_numbers<[1], [0], [0], [1], [0, 0, 1, 1], [], []>} : vector<4x32xf32>, vector<32x32xf32>, vector<4x32xf32> -> vector<4x32xf32>
    %c4_105 = arith.constant 4 : index
    %c0_106 = arith.constant 0 : index
    %c0_107 = arith.constant 0 : index
    %139 = vector.load %arg8[%c4_105, %c0_106, %c0_107] : memref<8x1x32xf32, #tpu.memory_space<vmem>>, vector<1x1x32xf32>
    %140 = vector.shape_cast %139 : vector<1x1x32xf32> to vector<1x32xf32>
    %141 = vector.broadcast %140 : vector<1x32xf32> to vector<4x32xf32>
    %142 = arith.addf %138, %141 : vector<4x32xf32>
    %cst_108 = arith.constant 0.000000e+00 : f32
    %143 = vector.broadcast %cst_108 : f32 to vector<4x32xf32>
    %144 = arith.maximumf %142, %143 : vector<4x32xf32>
    %c5 = arith.constant 5 : index
    %c0_109 = arith.constant 0 : index
    %c0_110 = arith.constant 0 : index
    %145 = vector.load %arg7[%c5, %c0_109, %c0_110] : memref<8x32x32xf32, #tpu.memory_space<vmem>>, vector<1x32x32xf32>
    %146 = vector.shape_cast %145 : vector<1x32x32xf32> to vector<32x32xf32>
    %cst_111 = arith.constant dense<0.000000e+00> : vector<4x32xf32>
    %147 = tpu.matmul %144, %146, %cst_111 {dimension_numbers = #tpu.dot_dimension_numbers<[1], [0], [0], [1], [0, 0, 1, 1], [], []>} : vector<4x32xf32>, vector<32x32xf32>, vector<4x32xf32> -> vector<4x32xf32>
    %c5_112 = arith.constant 5 : index
    %c0_113 = arith.constant 0 : index
    %c0_114 = arith.constant 0 : index
    %148 = vector.load %arg8[%c5_112, %c0_113, %c0_114] : memref<8x1x32xf32, #tpu.memory_space<vmem>>, vector<1x1x32xf32>
    %149 = vector.shape_cast %148 : vector<1x1x32xf32> to vector<1x32xf32>
    %150 = vector.broadcast %149 : vector<1x32xf32> to vector<4x32xf32>
    %151 = arith.addf %147, %150 : vector<4x32xf32>
    %cst_115 = arith.constant 0.000000e+00 : f32
    %152 = vector.broadcast %cst_115 : f32 to vector<4x32xf32>
    %153 = arith.maximumf %151, %152 : vector<4x32xf32>
    %c6_116 = arith.constant 6 : index
    %c0_117 = arith.constant 0 : index
    %c0_118 = arith.constant 0 : index
    %154 = vector.load %arg7[%c6_116, %c0_117, %c0_118] : memref<8x32x32xf32, #tpu.memory_space<vmem>>, vector<1x32x32xf32>
    %155 = vector.shape_cast %154 : vector<1x32x32xf32> to vector<32x32xf32>
    %cst_119 = arith.constant dense<0.000000e+00> : vector<4x32xf32>
    %156 = tpu.matmul %153, %155, %cst_119 {dimension_numbers = #tpu.dot_dimension_numbers<[1], [0], [0], [1], [0, 0, 1, 1], [], []>} : vector<4x32xf32>, vector<32x32xf32>, vector<4x32xf32> -> vector<4x32xf32>
    %c6_120 = arith.constant 6 : index
    %c0_121 = arith.constant 0 : index
    %c0_122 = arith.constant 0 : index
    %157 = vector.load %arg8[%c6_120, %c0_121, %c0_122] : memref<8x1x32xf32, #tpu.memory_space<vmem>>, vector<1x1x32xf32>
    %158 = vector.shape_cast %157 : vector<1x1x32xf32> to vector<1x32xf32>
    %159 = vector.broadcast %158 : vector<1x32xf32> to vector<4x32xf32>
    %160 = arith.addf %156, %159 : vector<4x32xf32>
    %cst_123 = arith.constant 0.000000e+00 : f32
    %161 = vector.broadcast %cst_123 : f32 to vector<4x32xf32>
    %162 = arith.maximumf %160, %161 : vector<4x32xf32>
    %c7 = arith.constant 7 : index
    %c0_124 = arith.constant 0 : index
    %c0_125 = arith.constant 0 : index
    %163 = vector.load %arg7[%c7, %c0_124, %c0_125] : memref<8x32x32xf32, #tpu.memory_space<vmem>>, vector<1x32x32xf32>
    %164 = vector.shape_cast %163 : vector<1x32x32xf32> to vector<32x32xf32>
    %cst_126 = arith.constant dense<0.000000e+00> : vector<4x32xf32>
    %165 = tpu.matmul %162, %164, %cst_126 {dimension_numbers = #tpu.dot_dimension_numbers<[1], [0], [0], [1], [0, 0, 1, 1], [], []>} : vector<4x32xf32>, vector<32x32xf32>, vector<4x32xf32> -> vector<4x32xf32>
    %c7_127 = arith.constant 7 : index
    %c0_128 = arith.constant 0 : index
    %c0_129 = arith.constant 0 : index
    %166 = vector.load %arg8[%c7_127, %c0_128, %c0_129] : memref<8x1x32xf32, #tpu.memory_space<vmem>>, vector<1x1x32xf32>
    %167 = vector.shape_cast %166 : vector<1x1x32xf32> to vector<1x32xf32>
    %168 = vector.broadcast %167 : vector<1x32xf32> to vector<4x32xf32>
    %169 = arith.addf %165, %168 : vector<4x32xf32>
    %cst_130 = arith.constant 0.000000e+00 : f32
    %170 = vector.broadcast %cst_130 : f32 to vector<4x32xf32>
    %171 = arith.maximumf %169, %170 : vector<4x32xf32>
    %c0_131 = arith.constant 0 : index
    %c0_132 = arith.constant 0 : index
    %172 = vector.load %arg9[%c0_131, %c0_132] : memref<32x8xf32, #tpu.memory_space<vmem>>, vector<32x8xf32>
    %cst_133 = arith.constant dense<0.000000e+00> : vector<4x8xf32>
    %173 = tpu.matmul %171, %172, %cst_133 {dimension_numbers = #tpu.dot_dimension_numbers<[1], [0], [0], [1], [0, 0, 1, 1], [], []>} : vector<4x32xf32>, vector<32x8xf32>, vector<4x8xf32> -> vector<4x8xf32>
    %c0_134 = arith.constant 0 : index
    %c0_135 = arith.constant 0 : index
    %174 = vector.load %arg10[%c0_134, %c0_135] : memref<1x8xf32, #tpu.memory_space<vmem>>, vector<1x8xf32>
    %175 = vector.broadcast %174 : vector<1x8xf32> to vector<4x8xf32>
    %176 = arith.addf %173, %175 : vector<4x8xf32>
    %c0_136 = arith.constant 0 : index
    %c0_137 = arith.constant 0 : index
    %177 = vector.load %arg11[%c0_136, %c0_137] : memref<4x8xf32, #tpu.memory_space<vmem>>, vector<4x8xf32>
    tpu.vector_store %arg11[%c0_136, %c0_137], %176 {strides = array<i32>} : memref<4x8xf32, #tpu.memory_space<vmem>>, vector<4x8xf32>,
    return
  }
}

</mosaic_0001>

<llo_original>
// kernel: tpu_custom_call.1
$region0: #{tpu_custom_call.1}
  #allocation0 [shape = 'u32[]', space=smem, size = 0x4, offset = 0x4, fixed_abs, tag = 'smem constant byte address 0x4 - core index']
  #allocation1 [shape = 'u32[144,128]{1,0:T(1,128)}', space=vmem, size = 0x12000, scoped, tag = 'internal scratch']
  #allocation2 [shape = 'f32[4,18]{1,0:T(4,128)}', space=vmem, size = 0x800, scoped, tag = 'scratch operand']
  %s0 = inlined_call_operand.vmem [shape: f32[12,1], index: 0, kind: input, shape index: {}]
  %s1 = inlined_call_operand.vmem [shape: f32[12,1], index: 1, kind: input, shape index: {}]
  %s2 = inlined_call_operand.vmem [shape: f32[1,18], index: 2, kind: input, shape index: {}]
  %s3 = inlined_call_operand.vmem [shape: f32[1,18], index: 3, kind: input, shape index: {}]
  %s4 = inlined_call_operand.vmem [shape: f32[36,18], index: 4, kind: input, shape index: {}]
  %s5 = inlined_call_operand.vmem [shape: f32[18,32], index: 5, kind: input, shape index: {}]
  %s6 = inlined_call_operand.vmem [shape: f32[1,32], index: 6, kind: input, shape index: {}]
  %s7 = inlined_call_operand.hbm [shape: f32[8,32,32], index: 7, kind: input, shape index: {}]
  %s8 = inlined_call_operand.vmem [shape: f32[8,1,32], index: 8, kind: input, shape index: {}]
  %s9 = inlined_call_operand.vmem [shape: f32[32,8], index: 9, kind: input, shape index: {}]
  %s10 = inlined_call_operand.vmem [shape: f32[1,8], index: 10, kind: input, shape index: {}]
  %s11 = inlined_call_operand.hbm [shape: f32[4,8], index: 11, kind: output, shape index: {}]
  %s12 = sld [smem:[#allocation0]]
  $region58: #{tpu_custom_call.1} parent=0
    _
  %s14 = ssub.s32 1, %s12
  %s15 = scalar_select 0, %s14, %s12
  $region1: #{tpu_custom_call.1} parent=0
    #allocation3 [shape = 'u8[131072]{0}', space=vmem, size = 0x20000, scoped, tag = 'input window, operand 7, single buffered']
    #allocation4 [shape = 's32[1]{0}', space=sflag, size = 0x4, scoped, tag = 'scoped memory for tpu_custom_call.1']
    #allocation5 [shape = 's32[1]{0}', space=sflag, size = 0x4, scoped, tag = 'scoped memory for tpu_custom_call.1']
    #allocation6 [shape = 'u8[2048]{0}', space=vmem, size = 0x800, scoped, tag = 'output window, operand 0, single buffered']
    %16 = vsyncpa [#allocation4], 0
    %17 = vsyncpa [#allocation5], 0
    // Predicated region
    $region2: #{tpu_custom_call.1} parent=1 // pred_check
      _
    $region3: #{tpu_custom_call.1} parent=1 // pred_check_branch
      %19 = sbr.rel (0) target = $region5
    $region4: #{tpu_custom_call.1} parent=1 // pred_region
      _
    $region5: #{tpu_custom_call.1} parent=1 // pred_fallthru
      _
    // Predicated region
    $region6: #{tpu_custom_call.1} parent=1 // pred_check
      _
    $region7: #{tpu_custom_call.1} parent=1 // pred_check_branch
      %21 = sbr.rel (0) target = $region9
    $region8: #{tpu_custom_call.1} parent=1 // pred_region
      _
    $region9: #{tpu_custom_call.1} parent=1 // pred_fallthru
      _
    // Predicated region
    $region10: #{tpu_custom_call.1} parent=1 // pred_check
      _
    $region11: #{tpu_custom_call.1} parent=1 // pred_check_branch
      %23 = sbr.rel (0) target = $region13
    $region12: #{tpu_custom_call.1} parent=1 // pred_region
      _
    $region13: #{tpu_custom_call.1} parent=1 // pred_fallthru
      _
    // Predicated region
    $region14: #{tpu_custom_call.1} parent=1 // pred_check
      _
    $region15: #{tpu_custom_call.1} parent=1 // pred_check_branch
      %25 = sbr.rel (0) target = $region17
    $region16: #{tpu_custom_call.1} parent=1 // pred_region
      _
    $region17: #{tpu_custom_call.1} parent=1 // pred_fallthru
      _
    // Predicated region
    $region18: #{tpu_custom_call.1} parent=1 // pred_check
      _
    $region19: #{tpu_custom_call.1} parent=1 // pred_check_branch
      %27 = sbr.rel (0) target = $region21
    $region20: #{tpu_custom_call.1} parent=1 // pred_region
      _
    $region21: #{tpu_custom_call.1} parent=1 // pred_fallthru
      _
    // Predicated region
    $region22: #{tpu_custom_call.1} parent=1 // pred_check
      _
    $region23: #{tpu_custom_call.1} parent=1 // pred_check_branch
      %29 = sbr.rel (0) target = $region25
    $region24: #{tpu_custom_call.1} parent=1 // pred_region
      _
    $region25: #{tpu_custom_call.1} parent=1 // pred_fallthru
      _
    // Predicated region
    $region26: #{tpu_custom_call.1} parent=1 // pred_check
      _
    $region27: #{tpu_custom_call.1} parent=1 // pred_check_branch
      %31 = sbr.rel (0) target = $region29
    $region28: #{tpu_custom_call.1} parent=1 // pred_region
      _
    $region29: #{tpu_custom_call.1} parent=1 // pred_fallthru
      _
    // Predicated region
    $region30: #{tpu_custom_call.1} parent=1 // pred_check
      _
    $region31: #{tpu_custom_call.1} parent=1 // pred_check_branch
      %33 = sbr.rel (0) target = $region33
    $region32: #{tpu_custom_call.1} parent=1 // pred_region
      %s35 = ssub.s32 4096, 4096
      %36 = vsyncadd [#allocation4], %s35
      %s37 = sshll.u32 [#allocation3], 4
      %s38 = int_to_ptr.vmem [resolvable:$true] %s37
      %43 = dma.hbm_to_vmem [thread:$0]  %s7, 4096, %s38, [#allocation4], 128, 128, 8
    $region33: #{tpu_custom_call.1} parent=1 // pred_fallthru
      _
    // Predicated region
    $region34: #{tpu_custom_call.1} parent=1 // pred_check
      _
    $region35: #{tpu_custom_call.1} parent=1 // pred_check_branch
      %45 = sbr.rel (0) target = $region37
    $region36: #{tpu_custom_call.1} parent=1 // pred_region
      _
    $region37: #{tpu_custom_call.1} parent=1 // pred_fallthru
      _
    // Predicated region
    $region38: #{tpu_custom_call.1} parent=1 // pred_check
      _
    $region39: #{tpu_custom_call.1} parent=1 // pred_check_branch
      %47 = sbr.rel (0) target = $region41
    $region40: #{tpu_custom_call.1} parent=1 // pred_region
      _
    $region41: #{tpu_custom_call.1} parent=1 // pred_fallthru
      _
    // Predicated region
    $region42: #{tpu_custom_call.1} parent=1 // pred_check
      _
    $region43: #{tpu_custom_call.1} parent=1 // pred_check_branch
      %49 = sbr.rel (0) target = $region45
    $region44: #{tpu_custom_call.1} parent=1 // pred_region
      _
    $region45: #{tpu_custom_call.1} parent=1 // pred_fallthru
      _
    // Predicated region
    $region46: #{tpu_custom_call.1} parent=1 // pred_check
      _
    $region47: #{tpu_custom_call.1} parent=1 // pred_check_branch
      %51 = sbr.rel (0) target = $region49
    $region48: #{tpu_custom_call.1} parent=1 // pred_region
      %52 = dma.done [#allocation4], 4096
    $region49: #{tpu_custom_call.1} parent=1 // pred_fallthru
      _
    %v53 = vld [vmem:[%s0] sm:$0xff]
    %v54 = vld [vmem:[%s0 + $0x8] sm:$0xf]
    %v55 = vld [vmem:[%s2] sm:$0x1]
    %57 = vset.pattern.permute.xlu0 0
    %58 = vperm.xlu0 %57, %v53
    %v59 = vpop.permute.xlu0 %58
    %62 = vset.pattern.permute.xlu0 0
    %63 = vperm.xlu0 %62, %v54
    %v64 = vpop.permute.xlu0 %63
    %v67 = vlaneseq
    %v68 = vshrl.u32 %v67, 7
    %v69 = vsub.s32 0, %v68
    %v70 = vrot.slane %v55, %v69
    %v72 = vsub.f32 %v59, %v70
    %v73 = vsub.f32 %v64, %v70
    %v74 = vmul.f32 %v72, %v72
    %v75 = vmul.f32 %v73, %v73
    %v76 = vsub.f32 0.0, %v74
    %v77 = vsub.f32 0.0, %v75
    %v78 = vmul.f32 %v76, 253.12497
    %v79 = vmul.f32 %v77, 253.12497
    %v80 = vmul.f32 %v78, 1.442695
    %v81 = vpow.pop %v80
    %v82 = vmul.f32 %v79, 1.442695
    %v83 = vpow.pop %v82
    %v84 = vld [vmem:[%s1] sm:$0xff]
    %v85 = vld [vmem:[%s1 + $0x8] sm:$0xf]
    %v86 = vld [vmem:[%s3] sm:$0x1]
    %88 = vset.pattern.permute.xlu0 0
    %89 = vperm.xlu0 %88, %v84
    %v90 = vpop.permute.xlu0 %89
    %93 = vset.pattern.permute.xlu0 0
    %94 = vperm.xlu0 %93, %v85
    %v95 = vpop.permute.xlu0 %94
    %v98 = vlaneseq
    %v99 = vshrl.u32 %v98, 7
    %v100 = vsub.s32 0, %v99
    %v101 = vrot.slane %v86, %v100
    %v103 = vsub.f32 %v90, %v101
    %v104 = vsub.f32 %v95, %v101
    %v105 = vmul.f32 %v103, %v103
    %v106 = vmul.f32 %v104, %v104
    %v107 = vsub.f32 0.0, %v105
    %v108 = vsub.f32 0.0, %v106
    %v109 = vmul.f32 %v107, 253.12497
    %v110 = vmul.f32 %v108, 253.12497
    %v111 = vmul.f32 %v109, 1.442695
    %v112 = vpow.pop %v111
    %v113 = vmul.f32 %v110, 1.442695
    %v114 = vpow.pop %v113
    %v115 = vld [vmem:[%s4] sm:$0xff]
    %v116 = vld [vmem:[%s4 + $0x8] sm:$0xff]
    %v117 = vld [vmem:[%s4 + $0x10] sm:$0xff]
    %v118 = vld [vmem:[%s4 + $0x18] sm:$0xff]
    %v119 = vld [vmem:[%s4 + $0x20] sm:$0xf]
    %vm120 = vcmask 146432
    %v122 = vsel %vm120, %v115, 0
    %v125 = vsel %vm120, %v116, 0
    %v128 = vsel %vm120, %v117, 0
    %v131 = vsel %vm120, %v118, 0
    %v134 = vsel %vm120, %v119, 0
    %v137 = vsel %vm120, %v112, 0
    %v140 = vsel %vm120, %v114, 0
    %142 = vmatprep.subr.mxu0 0.0
    %143 = vmatpush1.xpose.msra.mxu0 %v137
    %144 = vmatprep.subr.mxu0 0.0
    %145 = vmatpush1.xpose.msra.mxu0 %v140
    %146 = vmatprep.subr.mxu0 0.0
    %147 = vmatpush1.xpose.msra.mxu0 0.0
    %148 = vmatprep.subr.mxu0 0.0
    %149 = vmatpush1.xpose.msra.mxu0 0.0
    %150 = vmatprep.subr.mxu0 0.0
    %151 = vmatpush1.xpose.msra.mxu0 0.0
    %152 = vmatprep.subr.mxu0 0.0
    %153 = vmatpush1.xpose.msra.mxu0 0.0
    %154 = vmatprep.subr.mxu0 0.0
    %155 = vmatpush1.xpose.msra.mxu0 0.0
    %156 = vmatprep.subr.mxu0 0.0
    %157 = vmatpush1.xpose.msra.mxu0 0.0
    %158 = vmatprep.subr.mxu0 0.0
    %159 = vmatpush1.xpose.msra.mxu0 0.0
    %160 = vmatprep.subr.mxu0 0.0
    %161 = vmatpush1.xpose.msra.mxu0 0.0
    %162 = vmatprep.subr.mxu0 0.0
    %163 = vmatpush1.xpose.msra.mxu0 0.0
    %164 = vmatprep.subr.mxu0 0.0
    %165 = vmatpush1.xpose.msra.mxu0 0.0
    %166 = vmatprep.subr.mxu0 0.0
    %167 = vmatpush1.xpose.msra.mxu0 0.0
    %168 = vmatprep.subr.mxu0 0.0
    %169 = vmatpush1.xpose.msra.mxu0 0.0
    %170 = vmatprep.subr.mxu0 0.0
    %171 = vmatpush1.xpose.msra.mxu0 0.0
    %172 = vmatprep.subr.mxu0 0.0
    %173 = vmatpush1.xpose.msra.mxu0 0.0
    %174 = vmatprep.subr.mxu0 0.0
    %175 = vmatpush1.xpose.msra.mxu0 0.0
    %176 = vmatprep.subr.mxu0 0.0
    %177 = vmatpush1.xpose.msra.mxu0 0.0
    %178 = vmatprep.subr.mxu0 0.0
    %179 = vmatpush1.xpose.msra.mxu0 0.0
    %180 = vmatprep.subr.mxu0 0.0
    %181 = vmatpush1.xpose.msra.mxu0 0.0
    %182 = vmatprep.subr.mxu0 0.0
    %183 = vmatpush1.xpose.msra.mxu0 0.0
    %184 = vmatprep.subr.mxu0 0.0
    %185 = vmatpush1.xpose.msra.mxu0 0.0
    %186 = vmatprep.subr.mxu0 0.0
    %187 = vmatpush1.xpose.msra.mxu0 0.0
    %188 = vmatprep.subr.mxu0 0.0
    %189 = vmatpush1.xpose.msra.mxu0 0.0
    %190 = vmatprep.subr.mxu0 0.0
    %191 = vmatpush1.xpose.msra.mxu0 0.0
    %192 = vmatprep.subr.mxu0 0.0
    %193 = vmatpush1.xpose.msra.mxu0 0.0
    %194 = vmatprep.subr.mxu0 0.0
    %195 = vmatpush1.xpose.msra.mxu0 0.0
    %196 = vmatprep.subr.mxu0 0.0
    %197 = vmatpush1.xpose.msra.mxu0 0.0
    %198 = vmatprep.subr.mxu0 0.0
    %199 = vmatpush1.xpose.msra.mxu0 0.0
    %200 = vmatprep.subr.mxu0 0.0
    %201 = vmatpush1.xpose.msra.mxu0 0.0
    %202 = vmatprep.subr.mxu0 0.0
    %203 = vmatpush1.xpose.msra.mxu0 0.0
    %204 = vmatprep.subr.mxu0 0.0
    %205 = vmatpush1.xpose.msra.mxu0 0.0
    %206 = vmatprep.mubr.f32.mxu0 0.0
    %207 = vmatmul.mubr.f32.gmra.mrb[0].mxu0 %v122
    %v208 = vpop.f32.mrb[0].mxu0
    %v209 = vadd.f32 0.0, %v208
    %v210 = vpop.f32.mrb[0].mxu0
    %211 = vmatprep.mubr.f32.mxu0 0.0
    %212 = vmatmul.mubr.f32.gmra.mrb[0].mxu0 %v125
    %v213 = vpop.f32.mrb[0].mxu0
    %v214 = vadd.f32 0.0, %v213
    %v215 = vpop.f32.mrb[0].mxu0
    %216 = vmatprep.mubr.f32.mxu0 0.0
    %217 = vmatmul.mubr.f32.gmra.mrb[0].mxu0 %v128
    %v218 = vpop.f32.mrb[0].mxu0
    %v219 = vadd.f32 0.0, %v218
    %v220 = vpop.f32.mrb[0].mxu0
    %221 = vmatprep.mubr.f32.mxu0 0.0
    %222 = vmatmul.mubr.f32.gmra.mrb[0].mxu0 %v131
    %v223 = vpop.f32.mrb[0].mxu0
    %v224 = vadd.f32 0.0, %v223
    %v225 = vpop.f32.mrb[0].mxu0
    %226 = vmatprep.mubr.f32.mxu0 0.0
    %227 = vmatmul.mubr.f32.gmra.mrb[0].mxu0 %v134
    %v228 = vpop.f32.mrb[0].mxu0
    %v229 = vadd.f32 0.0, %v228
    %v230 = vpop.f32.mrb[0].mxu0
    %231 = vdwg.mxu0
    %v233 = vsel %vm120, %v81, 0
    %vm235 = vcmask 1041408
    %v237 = vsel %vm235, %v219, 0
    %239 = vmatprep.subr.mxu0 0.0
    %240 = vmatpush1.msra.mxu0 %v209
    %241 = vmatprep.subr.mxu0 0.0
    %242 = vmatpush1.msra.mxu0 %v214
    %243 = vmatprep.subr.mxu0 0.0
    %244 = vmatpush1.msra.mxu0 %v237
    %245 = vmatprep.subr.mxu0 0.0
    %246 = vmatpush1.msra.mxu0 0.0
    %247 = vmatprep.subr.mxu0 0.0
    %248 = vmatpush1.msra.mxu0 0.0
    %249 = vmatprep.subr.mxu0 0.0
    %250 = vmatpush1.msra.mxu0 0.0
    %251 = vmatprep.subr.mxu0 0.0
    %252 = vmatpush1.msra.mxu0 0.0
    %253 = vmatprep.subr.mxu0 0.0
    %254 = vmatpush1.msra.mxu0 0.0
    %255 = vmatprep.subr.mxu0 0.0
    %256 = vmatpush1.msra.mxu0 0.0
    %257 = vmatprep.subr.mxu0 0.0
    %258 = vmatpush1.msra.mxu0 0.0
    %259 = vmatprep.subr.mxu0 0.0
    %260 = vmatpush1.msra.mxu0 0.0
    %261 = vmatprep.subr.mxu0 0.0
    %262 = vmatpush1.msra.mxu0 0.0
    %263 = vmatprep.subr.mxu0 0.0
    %264 = vmatpush1.msra.mxu0 0.0
    %265 = vmatprep.subr.mxu0 0.0
    %266 = vmatpush1.msra.mxu0 0.0
    %267 = vmatprep.subr.mxu0 0.0
    %268 = vmatpush1.msra.mxu0 0.0
    %269 = vmatprep.subr.mxu0 0.0
    %270 = vmatpush1.msra.mxu0 0.0
    %271 = vmatprep.subr.mxu0 0.0
    %272 = vmatpush1.msra.mxu0 0.0
    %273 = vmatprep.subr.mxu0 0.0
    %274 = vmatpush1.msra.mxu0 0.0
    %275 = vmatprep.subr.mxu0 0.0
    %276 = vmatpush1.msra.mxu0 0.0
    %277 = vmatprep.subr.mxu0 0.0
    %278 = vmatpush1.msra.mxu0 0.0
    %279 = vmatprep.subr.mxu0 0.0
    %280 = vmatpush1.msra.mxu0 0.0
    %281 = vmatprep.subr.mxu0 0.0
    %282 = vmatpush1.msra.mxu0 0.0
    %283 = vmatprep.subr.mxu0 0.0
    %284 = vmatpush1.msra.mxu0 0.0
    %285 = vmatprep.subr.mxu0 0.0
    %286 = vmatpush1.msra.mxu0 0.0
    %287 = vmatprep.subr.mxu0 0.0
    %288 = vmatpush1.msra.mxu0 0.0
    %289 = vmatprep.subr.mxu0 0.0
    %290 = vmatpush1.msra.mxu0 0.0
    %291 = vmatprep.subr.mxu0 0.0
    %292 = vmatpush1.msra.mxu0 0.0
    %293 = vmatprep.subr.mxu0 0.0
    %294 = vmatpush1.msra.mxu0 0.0
    %295 = vmatprep.subr.mxu0 0.0
    %296 = vmatpush1.msra.mxu0 0.0
    %297 = vmatprep.subr.mxu0 0.0
    %298 = vmatpush1.msra.mxu0 0.0
    %299 = vmatprep.subr.mxu0 0.0
    %300 = vmatpush1.msra.mxu0 0.0
    %301 = vmatprep.subr.mxu0 0.0
    %302 = vmatpush1.msra.mxu0 0.0
    %303 = vmatprep.mubr.f32.mxu0 0.0
    %304 = vmatmul.mubr.f32.gmra.mrb[0].mxu0 %v233
    %v305 = vpop.f32.mrb[0].mxu0
    %v306 = vadd.f32 0.0, %v305
    %v307 = vpop.f32.mrb[0].mxu0
    %308 = vdwg.mxu0
    %vm309 = vcmask 16384
    %310 = vst.msk [vmem:[#allocation2] sm:$0x1] %vm309, %v306
    %312 = vrot.lane.b32.xlu0 %v306, 3
    %v313 = vpop.permute.xlu0 %312
    %vm315 = vcmask 42009
    %316 = vst.msk [vmem:[#allocation2 - $0x1] sm:$0x2] %vm315, %v313
    %317 = vrot.lane.b32.xlu0 %v306, 6
    %v318 = vpop.permute.xlu0 %317
    %vm320 = vcmask 67634
    %321 = vst.msk [vmem:[#allocation2 - $0x2] sm:$0x4] %vm320, %v318
    %vm324 = vcmask 1045504
    %v325 = vrot.slane %v219, 2
    %v326 = vrot.slane %v224, 2
    %v327 = vsel %vm324, %v325, %v326
    %v328 = vrot.slane %v229, 2
    %v329 = vsel %vm324, %v326, %v328
    %v332 = vsel %vm235, %v328, 0
    %334 = vmatprep.subr.mxu0 0.0
    %335 = vmatpush1.msra.mxu0 %v327
    %336 = vmatprep.subr.mxu0 0.0
    %337 = vmatpush1.msra.mxu0 %v329
    %338 = vmatprep.subr.mxu0 0.0
    %339 = vmatpush1.msra.mxu0 %v332
    %340 = vmatprep.subr.mxu0 0.0
    %341 = vmatpush1.msra.mxu0 0.0
    %342 = vmatprep.subr.mxu0 0.0
    %343 = vmatpush1.msra.mxu0 0.0
    %344 = vmatprep.subr.mxu0 0.0
    %345 = vmatpush1.msra.mxu0 0.0
    %346 = vmatprep.subr.mxu0 0.0
    %347 = vmatpush1.msra.mxu0 0.0
    %348 = vmatprep.subr.mxu0 0.0
    %349 = vmatpush1.msra.mxu0 0.0
    %350 = vmatprep.subr.mxu0 0.0
    %351 = vmatpush1.msra.mxu0 0.0
    %352 = vmatprep.subr.mxu0 0.0
    %353 = vmatpush1.msra.mxu0 0.0
    %354 = vmatprep.subr.mxu0 0.0
    %355 = vmatpush1.msra.mxu0 0.0
    %356 = vmatprep.subr.mxu0 0.0
    %357 = vmatpush1.msra.mxu0 0.0
    %358 = vmatprep.subr.mxu0 0.0
    %359 = vmatpush1.msra.mxu0 0.0
    %360 = vmatprep.subr.mxu0 0.0
    %361 = vmatpush1.msra.mxu0 0.0
    %362 = vmatprep.subr.mxu0 0.0
    %363 = vmatpush1.msra.mxu0 0.0
    %364 = vmatprep.subr.mxu0 0.0
    %365 = vmatpush1.msra.mxu0 0.0
    %366 = vmatprep.subr.mxu0 0.0
    %367 = vmatpush1.msra.mxu0 0.0
    %368 = vmatprep.subr.mxu0 0.0
    %369 = vmatpush1.msra.mxu0 0.0
    %370 = vmatprep.subr.mxu0 0.0
    %371 = vmatpush1.msra.mxu0 0.0
    %372 = vmatprep.subr.mxu0 0.0
    %373 = vmatpush1.msra.mxu0 0.0
    %374 = vmatprep.subr.mxu0 0.0
    %375 = vmatpush1.msra.mxu0 0.0
    %376 = vmatprep.subr.mxu0 0.0
    %377 = vmatpush1.msra.mxu0 0.0
    %378 = vmatprep.subr.mxu0 0.0
    %379 = vmatpush1.msra.mxu0 0.0
    %380 = vmatprep.subr.mxu0 0.0
    %381 = vmatpush1.msra.mxu0 0.0
    %382 = vmatprep.subr.mxu0 0.0
    %383 = vmatpush1.msra.mxu0 0.0
    %384 = vmatprep.subr.mxu0 0.0
    %385 = vmatpush1.msra.mxu0 0.0
    %386 = vmatprep.subr.mxu0 0.0
    %387 = vmatpush1.msra.mxu0 0.0
    %388 = vmatprep.subr.mxu0 0.0
    %389 = vmatpush1.msra.mxu0 0.0
    %390 = vmatprep.subr.mxu0 0.0
    %391 = vmatpush1.msra.mxu0 0.0
    %392 = vmatprep.subr.mxu0 0.0
    %393 = vmatpush1.msra.mxu0 0.0
    %394 = vmatprep.subr.mxu0 0.0
    %395 = vmatpush1.msra.mxu0 0.0
    %396 = vmatprep.subr.mxu0 0.0
    %397 = vmatpush1.msra.mxu0 0.0
    %398 = vmatprep.mubr.f32.mxu0 0.0
    %399 = vmatmul.mubr.f32.gmra.mrb[0].mxu0 %v233
    %v400 = vpop.f32.mrb[0].mxu0
    %v401 = vadd.f32 0.0, %v400
    %v402 = vpop.f32.mrb[0].mxu0
    %403 = vdwg.mxu0
    %405 = vrot.lane.b32.xlu0 %v401, 9
    %v406 = vpop.permute.xlu0 %405
    %vm408 = vcmask 90184
    %409 = vst.msk [vmem:[#allocation2] sm:$0x1] %vm408, %v406
    %410 = vrot.lane.b32.xlu0 %v401, 12
    %v411 = vpop.permute.xlu0 %410
    %vm413 = vcmask 115809
    %414 = vst.msk [vmem:[#allocation2 - $0x1] sm:$0x2] %vm413, %v411
    %415 = vrot.lane.b32.xlu0 %v401, 15
    %v416 = vpop.permute.xlu0 %415
    %vm418 = vcmask 141434
    %419 = vst.msk [vmem:[#allocation2 - $0x2] sm:$0x4] %vm418, %v416
    %v420 = vrot.slane %v81, 3
    %423 = vrot.lane.b32.xlu0 %v209, 125
    %v424 = vpop.permute.xlu0 %423
    %425 = vrot.lane.b32.xlu0 %v214, 125
    %v426 = vpop.permute.xlu0 %425
    %427 = vrot.lane.b32.xlu0 %v219, 125
    %v428 = vpop.permute.xlu0 %427
    %v431 = vsel %vm120, %v420, 0
    %v433 = vsel %vm235, %v428, 0
    %435 = vmatprep.subr.mxu0 0.0
    %436 = vmatpush1.msra.mxu0 %v424
    %437 = vmatprep.subr.mxu0 0.0
    %438 = vmatpush1.msra.mxu0 %v426
    %439 = vmatprep.subr.mxu0 0.0
    %440 = vmatpush1.msra.mxu0 %v433
    %441 = vmatprep.subr.mxu0 0.0
    %442 = vmatpush1.msra.mxu0 0.0
    %443 = vmatprep.subr.mxu0 0.0
    %444 = vmatpush1.msra.mxu0 0.0
    %445 = vmatprep.subr.mxu0 0.0
    %446 = vmatpush1.msra.mxu0 0.0
    %447 = vmatprep.subr.mxu0 0.0
    %448 = vmatpush1.msra.mxu0 0.0
    %449 = vmatprep.subr.mxu0 0.0
    %450 = vmatpush1.msra.mxu0 0.0
    %451 = vmatprep.subr.mxu0 0.0
    %452 = vmatpush1.msra.mxu0 0.0
    %453 = vmatprep.subr.mxu0 0.0
    %454 = vmatpush1.msra.mxu0 0.0
    %455 = vmatprep.subr.mxu0 0.0
    %456 = vmatpush1.msra.mxu0 0.0
    %457 = vmatprep.subr.mxu0 0.0
    %458 = vmatpush1.msra.mxu0 0.0
    %459 = vmatprep.subr.mxu0 0.0
    %460 = vmatpush1.msra.mxu0 0.0
    %461 = vmatprep.subr.mxu0 0.0
    %462 = vmatpush1.msra.mxu0 0.0
    %463 = vmatprep.subr.mxu0 0.0
    %464 = vmatpush1.msra.mxu0 0.0
    %465 = vmatprep.subr.mxu0 0.0
    %466 = vmatpush1.msra.mxu0 0.0
    %467 = vmatprep.subr.mxu0 0.0
    %468 = vmatpush1.msra.mxu0 0.0
    %469 = vmatprep.subr.mxu0 0.0
    %470 = vmatpush1.msra.mxu0 0.0
    %471 = vmatprep.subr.mxu0 0.0
    %472 = vmatpush1.msra.mxu0 0.0
    %473 = vmatprep.subr.mxu0 0.0
    %474 = vmatpush1.msra.mxu0 0.0
    %475 = vmatprep.subr.mxu0 0.0
    %476 = vmatpush1.msra.mxu0 0.0
    %477 = vmatprep.subr.mxu0 0.0
    %478 = vmatpush1.msra.mxu0 0.0
    %479 = vmatprep.subr.mxu0 0.0
    %480 = vmatpush1.msra.mxu0 0.0
    %481 = vmatprep.subr.mxu0 0.0
    %482 = vmatpush1.msra.mxu0 0.0
    %483 = vmatprep.subr.mxu0 0.0
    %484 = vmatpush1.msra.mxu0 0.0
    %485 = vmatprep.subr.mxu0 0.0
    %486 = vmatpush1.msra.mxu0 0.0
    %487 = vmatprep.subr.mxu0 0.0
    %488 = vmatpush1.msra.mxu0 0.0
    %489 = vmatprep.subr.mxu0 0.0
    %490 = vmatpush1.msra.mxu0 0.0
    %491 = vmatprep.subr.mxu0 0.0
    %492 = vmatpush1.msra.mxu0 0.0
    %493 = vmatprep.subr.mxu0 0.0
    %494 = vmatpush1.msra.mxu0 0.0
    %495 = vmatprep.subr.mxu0 0.0
    %496 = vmatpush1.msra.mxu0 0.0
    %497 = vmatprep.subr.mxu0 0.0
    %498 = vmatpush1.msra.mxu0 0.0
    %499 = vmatprep.mubr.f32.mxu0 0.0
    %500 = vmatmul.mubr.f32.gmra.mrb[0].mxu0 %v431
    %v501 = vpop.f32.mrb[0].mxu0
    %v502 = vadd.f32 0.0, %v501
    %v503 = vpop.f32.mrb[0].mxu0
    %504 = vdwg.mxu0
    %505 = vst.msk [vmem:[#allocation2 + $0x1] sm:$0x1] %vm309, %v502
    %507 = vrot.lane.b32.xlu0 %v502, 3
    %v508 = vpop.permute.xlu0 %507
    %510 = vst.msk [vmem:[#allocation2] sm:$0x2] %vm315, %v508
    %511 = vrot.lane.b32.xlu0 %v502, 6
    %v512 = vpop.permute.xlu0 %511
    %514 = vst.msk [vmem:[#allocation2 - $0x1] sm:$0x4] %vm320, %v512
    %515 = vrot.lane.b32.xlu0 %v327, 125
    %v516 = vpop.permute.xlu0 %515
    %517 = vrot.lane.b32.xlu0 %v329, 125
    %v518 = vpop.permute.xlu0 %517
    %519 = vrot.lane.b32.xlu0 %v328, 125
    %v520 = vpop.permute.xlu0 %519
    %v523 = vsel %vm235, %v520, 0
    %525 = vmatprep.subr.mxu0 0.0
    %526 = vmatpush1.msra.mxu0 %v516
    %527 = vmatprep.subr.mxu0 0.0
    %528 = vmatpush1.msra.mxu0 %v518
    %529 = vmatprep.subr.mxu0 0.0
    %530 = vmatpush1.msra.mxu0 %v523
    %531 = vmatprep.subr.mxu0 0.0
    %532 = vmatpush1.msra.mxu0 0.0
    %533 = vmatprep.subr.mxu0 0.0
    %534 = vmatpush1.msra.mxu0 0.0
    %535 = vmatprep.subr.mxu0 0.0
    %536 = vmatpush1.msra.mxu0 0.0
    %537 = vmatprep.subr.mxu0 0.0
    %538 = vmatpush1.msra.mxu0 0.0
    %539 = vmatprep.subr.mxu0 0.0
    %540 = vmatpush1.msra.mxu0 0.0
    %541 = vmatprep.subr.mxu0 0.0
    %542 = vmatpush1.msra.mxu0 0.0
    %543 = vmatprep.subr.mxu0 0.0
    %544 = vmatpush1.msra.mxu0 0.0
    %545 = vmatprep.subr.mxu0 0.0
    %546 = vmatpush1.msra.mxu0 0.0
    %547 = vmatprep.subr.mxu0 0.0
    %548 = vmatpush1.msra.mxu0 0.0
    %549 = vmatprep.subr.mxu0 0.0
    %550 = vmatpush1.msra.mxu0 0.0
    %551 = vmatprep.subr.mxu0 0.0
    %552 = vmatpush1.msra.mxu0 0.0
    %553 = vmatprep.subr.mxu0 0.0
    %554 = vmatpush1.msra.mxu0 0.0
    %555 = vmatprep.subr.mxu0 0.0
    %556 = vmatpush1.msra.mxu0 0.0
    %557 = vmatprep.subr.mxu0 0.0
    %558 = vmatpush1.msra.mxu0 0.0
    %559 = vmatprep.subr.mxu0 0.0
    %560 = vmatpush1.msra.mxu0 0.0
    %561 = vmatprep.subr.mxu0 0.0
    %562 = vmatpush1.msra.mxu0 0.0
    %563 = vmatprep.subr.mxu0 0.0
    %564 = vmatpush1.msra.mxu0 0.0
    %565 = vmatprep.subr.mxu0 0.0
    %566 = vmatpush1.msra.mxu0 0.0
    %567 = vmatprep.subr.mxu0 0.0
    %568 = vmatpush1.msra.mxu0 0.0
    %569 = vmatprep.subr.mxu0 0.0
    %570 = vmatpush1.msra.mxu0 0.0
    %571 = vmatprep.subr.mxu0 0.0
    %572 = vmatpush1.msra.mxu0 0.0
    %573 = vmatprep.subr.mxu0 0.0
    %574 = vmatpush1.msra.mxu0 0.0
    %575 = vmatprep.subr.mxu0 0.0
    %576 = vmatpush1.msra.mxu0 0.0
    %577 = vmatprep.subr.mxu0 0.0
    %578 = vmatpush1.msra.mxu0 0.0
    %579 = vmatprep.subr.mxu0 0.0
    %580 = vmatpush1.msra.mxu0 0.0
    %581 = vmatprep.subr.mxu0 0.0
    %582 = vmatpush1.msra.mxu0 0.0
    %583 = vmatprep.subr.mxu0 0.0
    %584 = vmatpush1.msra.mxu0 0.0
    %585 = vmatprep.subr.mxu0 0.0
    %586 = vmatpush1.msra.mxu0 0.0
    %587 = vmatprep.subr.mxu0 0.0
    %588 = vmatpush1.msra.mxu0 0.0
    %589 = vmatprep.mubr.f32.mxu0 0.0
    %590 = vmatmul.mubr.f32.gmra.mrb[0].mxu0 %v431
    %v591 = vpop.f32.mrb[0].mxu0
    %v592 = vadd.f32 0.0, %v591
    %v593 = vpop.f32.mrb[0].mxu0
    %594 = vdwg.mxu0
    %596 = vrot.lane.b32.xlu0 %v592, 9
    %v597 = vpop.permute.xlu0 %596
    %599 = vst.msk [vmem:[#allocation2 + $0x1] sm:$0x1] %vm408, %v597
    %600 = vrot.lane.b32.xlu0 %v592, 12
    %v601 = vpop.permute.xlu0 %600
    %603 = vst.msk [vmem:[#allocation2] sm:$0x2] %vm413, %v601
    %604 = vrot.lane.b32.xlu0 %v592, 15
    %v605 = vpop.permute.xlu0 %604
    %607 = vst.msk [vmem:[#allocation2 - $0x1] sm:$0x4] %vm418, %v605
    %v609 = vrot.slane %v81, 6
    %v610 = vrot.slane %v83, 6
    %v611 = vsel %vm235, %v609, %v610
    %612 = vrot.lane.b32.xlu0 %v209, 122
    %v613 = vpop.permute.xlu0 %612
    %614 = vrot.lane.b32.xlu0 %v214, 122
    %v615 = vpop.permute.xlu0 %614
    %616 = vrot.lane.b32.xlu0 %v219, 122
    %v617 = vpop.permute.xlu0 %616
    %v620 = vsel %vm120, %v611, 0
    %v622 = vsel %vm235, %v617, 0
    %624 = vmatprep.subr.mxu0 0.0
    %625 = vmatpush1.msra.mxu0 %v613
    %626 = vmatprep.subr.mxu0 0.0
    %627 = vmatpush1.msra.mxu0 %v615
    %628 = vmatprep.subr.mxu0 0.0
    %629 = vmatpush1.msra.mxu0 %v622
    %630 = vmatprep.subr.mxu0 0.0
    %631 = vmatpush1.msra.mxu0 0.0
    %632 = vmatprep.subr.mxu0 0.0
    %633 = vmatpush1.msra.mxu0 0.0
    %634 = vmatprep.subr.mxu0 0.0
    %635 = vmatpush1.msra.mxu0 0.0
    %636 = vmatprep.subr.mxu0 0.0
    %637 = vmatpush1.msra.mxu0 0.0
    %638 = vmatprep.subr.mxu0 0.0
    %639 = vmatpush1.msra.mxu0 0.0
    %640 = vmatprep.subr.mxu0 0.0
    %641 = vmatpush1.msra.mxu0 0.0
    %642 = vmatprep.subr.mxu0 0.0
    %643 = vmatpush1.msra.mxu0 0.0
    %644 = vmatprep.subr.mxu0 0.0
    %645 = vmatpush1.msra.mxu0 0.0
    %646 = vmatprep.subr.mxu0 0.0
    %647 = vmatpush1.msra.mxu0 0.0
    %648 = vmatprep.subr.mxu0 0.0
    %649 = vmatpush1.msra.mxu0 0.0
    %650 = vmatprep.subr.mxu0 0.0
    %651 = vmatpush1.msra.mxu0 0.0
    %652 = vmatprep.subr.mxu0 0.0
    %653 = vmatpush1.msra.mxu0 0.0
    %654 = vmatprep.subr.mxu0 0.0
    %655 = vmatpush1.msra.mxu0 0.0
    %656 = vmatprep.subr.mxu0 0.0
    %657 = vmatpush1.msra.mxu0 0.0
    %658 = vmatprep.subr.mxu0 0.0
    %659 = vmatpush1.msra.mxu0 0.0
    %660 = vmatprep.subr.mxu0 0.0
    %661 = vmatpush1.msra.mxu0 0.0
    %662 = vmatprep.subr.mxu0 0.0
    %663 = vmatpush1.msra.mxu0 0.0
    %664 = vmatprep.subr.mxu0 0.0
    %665 = vmatpush1.msra.mxu0 0.0
    %666 = vmatprep.subr.mxu0 0.0
    %667 = vmatpush1.msra.mxu0 0.0
    %668 = vmatprep.subr.mxu0 0.0
    %669 = vmatpush1.msra.mxu0 0.0
    %670 = vmatprep.subr.mxu0 0.0
    %671 = vmatpush1.msra.mxu0 0.0
    %672 = vmatprep.subr.mxu0 0.0
    %673 = vmatpush1.msra.mxu0 0.0
    %674 = vmatprep.subr.mxu0 0.0
    %675 = vmatpush1.msra.mxu0 0.0
    %676 = vmatprep.subr.mxu0 0.0
    %677 = vmatpush1.msra.mxu0 0.0
    %678 = vmatprep.subr.mxu0 0.0
    %679 = vmatpush1.msra.mxu0 0.0
    %680 = vmatprep.subr.mxu0 0.0
    %681 = vmatpush1.msra.mxu0 0.0
    %682 = vmatprep.subr.mxu0 0.0
    %683 = vmatpush1.msra.mxu0 0.0
    %684 = vmatprep.subr.mxu0 0.0
    %685 = vmatpush1.msra.mxu0 0.0
    %686 = vmatprep.subr.mxu0 0.0
    %687 = vmatpush1.msra.mxu0 0.0
    %688 = vmatprep.mubr.f32.mxu0 0.0
    %689 = vmatmul.mubr.f32.gmra.mrb[0].mxu0 %v620
    %v690 = vpop.f32.mrb[0].mxu0
    %v691 = vadd.f32 0.0, %v690
    %v692 = vpop.f32.mrb[0].mxu0
    %693 = vdwg.mxu0
    %694 = vst.msk [vmem:[#allocation2 + $0x2] sm:$0x1] %vm309, %v691
    %696 = vrot.lane.b32.xlu0 %v691, 3
    %v697 = vpop.permute.xlu0 %696
    %699 = vst.msk [vmem:[#allocation2 + $0x1] sm:$0x2] %vm315, %v697
    %700 = vrot.lane.b32.xlu0 %v691, 6
    %v701 = vpop.permute.xlu0 %700
    %703 = vst.msk [vmem:[#allocation2] sm:$0x4] %vm320, %v701
    %704 = vrot.lane.b32.xlu0 %v327, 122
    %v705 = vpop.permute.xlu0 %704
    %706 = vrot.lane.b32.xlu0 %v329, 122
    %v707 = vpop.permute.xlu0 %706
    %708 = vrot.lane.b32.xlu0 %v328, 122
    %v709 = vpop.permute.xlu0 %708
    %v712 = vsel %vm235, %v709, 0
    %714 = vmatprep.subr.mxu0 0.0
    %715 = vmatpush1.msra.mxu0 %v705
    %716 = vmatprep.subr.mxu0 0.0
    %717 = vmatpush1.msra.mxu0 %v707
    %718 = vmatprep.subr.mxu0 0.0
    %719 = vmatpush1.msra.mxu0 %v712
    %720 = vmatprep.subr.mxu0 0.0
    %721 = vmatpush1.msra.mxu0 0.0
    %722 = vmatprep.subr.mxu0 0.0
    %723 = vmatpush1.msra.mxu0 0.0
    %724 = vmatprep.subr.mxu0 0.0
    %725 = vmatpush1.msra.mxu0 0.0
    %726 = vmatprep.subr.mxu0 0.0
    %727 = vmatpush1.msra.mxu0 0.0
    %728 = vmatprep.subr.mxu0 0.0
    %729 = vmatpush1.msra.mxu0 0.0
    %730 = vmatprep.subr.mxu0 0.0
    %731 = vmatpush1.msra.mxu0 0.0
    %732 = vmatprep.subr.mxu0 0.0
    %733 = vmatpush1.msra.mxu0 0.0
    %734 = vmatprep.subr.mxu0 0.0
    %735 = vmatpush1.msra.mxu0 0.0
    %736 = vmatprep.subr.mxu0 0.0
    %737 = vmatpush1.msra.mxu0 0.0
    %738 = vmatprep.subr.mxu0 0.0
    %739 = vmatpush1.msra.mxu0 0.0
    %740 = vmatprep.subr.mxu0 0.0
    %741 = vmatpush1.msra.mxu0 0.0
    %742 = vmatprep.subr.mxu0 0.0
    %743 = vmatpush1.msra.mxu0 0.0
    %744 = vmatprep.subr.mxu0 0.0
    %745 = vmatpush1.msra.mxu0 0.0
    %746 = vmatprep.subr.mxu0 0.0
    %747 = vmatpush1.msra.mxu0 0.0
    %748 = vmatprep.subr.mxu0 0.0
    %749 = vmatpush1.msra.mxu0 0.0
    %750 = vmatprep.subr.mxu0 0.0
    %751 = vmatpush1.msra.mxu0 0.0
    %752 = vmatprep.subr.mxu0 0.0
    %753 = vmatpush1.msra.mxu0 0.0
    %754 = vmatprep.subr.mxu0 0.0
    %755 = vmatpush1.msra.mxu0 0.0
    %756 = vmatprep.subr.mxu0 0.0
    %757 = vmatpush1.msra.mxu0 0.0
    %758 = vmatprep.subr.mxu0 0.0
    %759 = vmatpush1.msra.mxu0 0.0
    %760 = vmatprep.subr.mxu0 0.0
    %761 = vmatpush1.msra.mxu0 0.0
    %762 = vmatprep.subr.mxu0 0.0
    %763 = vmatpush1.msra.mxu0 0.0
    %764 = vmatprep.subr.mxu0 0.0
    %765 = vmatpush1.msra.mxu0 0.0
    %766 = vmatprep.subr.mxu0 0.0
    %767 = vmatpush1.msra.mxu0 0.0
    %768 = vmatprep.subr.mxu0 0.0
    %769 = vmatpush1.msra.mxu0 0.0
    %770 = vmatprep.subr.mxu0 0.0
    %771 = vmatpush1.msra.mxu0 0.0
    %772 = vmatprep.subr.mxu0 0.0
    %773 = vmatpush1.msra.mxu0 0.0
    %774 = vmatprep.subr.mxu0 0.0
    %775 = vmatpush1.msra.mxu0 0.0
    %776 = vmatprep.subr.mxu0 0.0
    %777 = vmatpush1.msra.mxu0 0.0
    %778 = vmatprep.mubr.f32.mxu0 0.0
    %779 = vmatmul.mubr.f32.gmra.mrb[0].mxu0 %v620
    %v780 = vpop.f32.mrb[0].mxu0
    %v781 = vadd.f32 0.0, %v780
    %v782 = vpop.f32.mrb[0].mxu0
    %783 = vdwg.mxu0
    %785 = vrot.lane.b32.xlu0 %v781, 9
    %v786 = vpop.permute.xlu0 %785
    %788 = vst.msk [vmem:[#allocation2 + $0x2] sm:$0x1] %vm408, %v786
    %789 = vrot.lane.b32.xlu0 %v781, 12
    %v790 = vpop.permute.xlu0 %789
    %792 = vst.msk [vmem:[#allocation2 + $0x1] sm:$0x2] %vm413, %v790
    %793 = vrot.lane.b32.xlu0 %v781, 15
    %v794 = vpop.permute.xlu0 %793
    %796 = vst.msk [vmem:[#allocation2] sm:$0x4] %vm418, %v794
    %v797 = vrot.slane %v83, 1
    %798 = vrot.lane.b32.xlu0 %v209, 119
    %v799 = vpop.permute.xlu0 %798
    %800 = vrot.lane.b32.xlu0 %v214, 119
    %v801 = vpop.permute.xlu0 %800
    %802 = vrot.lane.b32.xlu0 %v219, 119
    %v803 = vpop.permute.xlu0 %802
    %v806 = vsel %vm120, %v797, 0
    %v808 = vsel %vm235, %v803, 0
    %810 = vmatprep.subr.mxu0 0.0
    %811 = vmatpush1.msra.mxu0 %v799
    %812 = vmatprep.subr.mxu0 0.0
    %813 = vmatpush1.msra.mxu0 %v801
    %814 = vmatprep.subr.mxu0 0.0
    %815 = vmatpush1.msra.mxu0 %v808
    %816 = vmatprep.subr.mxu0 0.0
    %817 = vmatpush1.msra.mxu0 0.0
    %818 = vmatprep.subr.mxu0 0.0
    %819 = vmatpush1.msra.mxu0 0.0
    %820 = vmatprep.subr.mxu0 0.0
    %821 = vmatpush1.msra.mxu0 0.0
    %822 = vmatprep.subr.mxu0 0.0
    %823 = vmatpush1.msra.mxu0 0.0
    %824 = vmatprep.subr.mxu0 0.0
    %825 = vmatpush1.msra.mxu0 0.0
    %826 = vmatprep.subr.mxu0 0.0
    %827 = vmatpush1.msra.mxu0 0.0
    %828 = vmatprep.subr.mxu0 0.0
    %829 = vmatpush1.msra.mxu0 0.0
    %830 = vmatprep.subr.mxu0 0.0
    %831 = vmatpush1.msra.mxu0 0.0
    %832 = vmatprep.subr.mxu0 0.0
    %833 = vmatpush1.msra.mxu0 0.0
    %834 = vmatprep.subr.mxu0 0.0
    %835 = vmatpush1.msra.mxu0 0.0
    %836 = vmatprep.subr.mxu0 0.0
    %837 = vmatpush1.msra.mxu0 0.0
    %838 = vmatprep.subr.mxu0 0.0
    %839 = vmatpush1.msra.mxu0 0.0
    %840 = vmatprep.subr.mxu0 0.0
    %841 = vmatpush1.msra.mxu0 0.0
    %842 = vmatprep.subr.mxu0 0.0
    %843 = vmatpush1.msra.mxu0 0.0
    %844 = vmatprep.subr.mxu0 0.0
    %845 = vmatpush1.msra.mxu0 0.0
    %846 = vmatprep.subr.mxu0 0.0
    %847 = vmatpush1.msra.mxu0 0.0
    %848 = vmatprep.subr.mxu0 0.0
    %849 = vmatpush1.msra.mxu0 0.0
    %850 = vmatprep.subr.mxu0 0.0
    %851 = vmatpush1.msra.mxu0 0.0
    %852 = vmatprep.subr.mxu0 0.0
    %853 = vmatpush1.msra.mxu0 0.0
    %854 = vmatprep.subr.mxu0 0.0
    %855 = vmatpush1.msra.mxu0 0.0
    %856 = vmatprep.subr.mxu0 0.0
    %857 = vmatpush1.msra.mxu0 0.0
    %858 = vmatprep.subr.mxu0 0.0
    %859 = vmatpush1.msra.mxu0 0.0
    %860 = vmatprep.subr.mxu0 0.0
    %861 = vmatpush1.msra.mxu0 0.0
    %862 = vmatprep.subr.mxu0 0.0
    %863 = vmatpush1.msra.mxu0 0.0
    %864 = vmatprep.subr.mxu0 0.0
    %865 = vmatpush1.msra.mxu0 0.0
    %866 = vmatprep.subr.mxu0 0.0
    %867 = vmatpush1.msra.mxu0 0.0
    %868 = vmatprep.subr.mxu0 0.0
    %869 = vmatpush1.msra.mxu0 0.0
    %870 = vmatprep.subr.mxu0 0.0
    %871 = vmatpush1.msra.mxu0 0.0
    %872 = vmatprep.subr.mxu0 0.0
    %873 = vmatpush1.msra.mxu0 0.0
    %874 = vmatprep.mubr.f32.mxu0 0.0
    %875 = vmatmul.mubr.f32.gmra.mrb[0].mxu0 %v806
    %v876 = vpop.f32.mrb[0].mxu0
    %v877 = vadd.f32 0.0, %v876
    %v878 = vpop.f32.mrb[0].mxu0
    %879 = vdwg.mxu0
    %880 = vst.msk [vmem:[#allocation2 + $0x3] sm:$0x1] %vm309, %v877
    %882 = vrot.lane.b32.xlu0 %v877, 3
    %v883 = vpop.permute.xlu0 %882
    %885 = vst.msk [vmem:[#allocation2 + $0x2] sm:$0x2] %vm315, %v883
    %886 = vrot.lane.b32.xlu0 %v877, 6
    %v887 = vpop.permute.xlu0 %886
    %889 = vst.msk [vmem:[#allocation2 + $0x1] sm:$0x4] %vm320, %v887
    %890 = vrot.lane.b32.xlu0 %v327, 119
    %v891 = vpop.permute.xlu0 %890
    %892 = vrot.lane.b32.xlu0 %v329, 119
    %v893 = vpop.permute.xlu0 %892
    %894 = vrot.lane.b32.xlu0 %v328, 119
    %v895 = vpop.permute.xlu0 %894
    %v898 = vsel %vm235, %v895, 0
    %900 = vmatprep.subr.mxu0 0.0
    %901 = vmatpush1.msra.mxu0 %v891
    %902 = vmatprep.subr.mxu0 0.0
    %903 = vmatpush1.msra.mxu0 %v893
    %904 = vmatprep.subr.mxu0 0.0
    %905 = vmatpush1.msra.mxu0 %v898
    %906 = vmatprep.subr.mxu0 0.0
    %907 = vmatpush1.msra.mxu0 0.0
    %908 = vmatprep.subr.mxu0 0.0
    %909 = vmatpush1.msra.mxu0 0.0
    %910 = vmatprep.subr.mxu0 0.0
    %911 = vmatpush1.msra.mxu0 0.0
    %912 = vmatprep.subr.mxu0 0.0
    %913 = vmatpush1.msra.mxu0 0.0
    %914 = vmatprep.subr.mxu0 0.0
    %915 = vmatpush1.msra.mxu0 0.0
    %916 = vmatprep.subr.mxu0 0.0
    %917 = vmatpush1.msra.mxu0 0.0
    %918 = vmatprep.subr.mxu0 0.0
    %919 = vmatpush1.msra.mxu0 0.0
    %920 = vmatprep.subr.mxu0 0.0
    %921 = vmatpush1.msra.mxu0 0.0
    %922 = vmatprep.subr.mxu0 0.0
    %923 = vmatpush1.msra.mxu0 0.0
    %924 = vmatprep.subr.mxu0 0.0
    %925 = vmatpush1.msra.mxu0 0.0
    %926 = vmatprep.subr.mxu0 0.0
    %927 = vmatpush1.msra.mxu0 0.0
    %928 = vmatprep.subr.mxu0 0.0
    %929 = vmatpush1.msra.mxu0 0.0
    %930 = vmatprep.subr.mxu0 0.0
    %931 = vmatpush1.msra.mxu0 0.0
    %932 = vmatprep.subr.mxu0 0.0
    %933 = vmatpush1.msra.mxu0 0.0
    %934 = vmatprep.subr.mxu0 0.0
    %935 = vmatpush1.msra.mxu0 0.0
    %936 = vmatprep.subr.mxu0 0.0
    %937 = vmatpush1.msra.mxu0 0.0
    %938 = vmatprep.subr.mxu0 0.0
    %939 = vmatpush1.msra.mxu0 0.0
    %940 = vmatprep.subr.mxu0 0.0
    %941 = vmatpush1.msra.mxu0 0.0
    %942 = vmatprep.subr.mxu0 0.0
    %943 = vmatpush1.msra.mxu0 0.0
    %944 = vmatprep.subr.mxu0 0.0
    %945 = vmatpush1.msra.mxu0 0.0
    %946 = vmatprep.subr.mxu0 0.0
    %947 = vmatpush1.msra.mxu0 0.0
    %948 = vmatprep.subr.mxu0 0.0
    %949 = vmatpush1.msra.mxu0 0.0
    %950 = vmatprep.subr.mxu0 0.0
    %951 = vmatpush1.msra.mxu0 0.0
    %952 = vmatprep.subr.mxu0 0.0
    %953 = vmatpush1.msra.mxu0 0.0
    %954 = vmatprep.subr.mxu0 0.0
    %955 = vmatpush1.msra.mxu0 0.0
    %956 = vmatprep.subr.mxu0 0.0
    %957 = vmatpush1.msra.mxu0 0.0
    %958 = vmatprep.subr.mxu0 0.0
    %959 = vmatpush1.msra.mxu0 0.0
    %960 = vmatprep.subr.mxu0 0.0
    %961 = vmatpush1.msra.mxu0 0.0
    %962 = vmatprep.subr.mxu0 0.0
    %963 = vmatpush1.msra.mxu0 0.0
    %964 = vmatprep.mubr.f32.mxu0 0.0
    %965 = vmatmul.mubr.f32.gmra.mrb[0].mxu0 %v806
    %v966 = vpop.f32.mrb[0].mxu0
    %v967 = vadd.f32 0.0, %v966
    %v968 = vpop.f32.mrb[0].mxu0
    %969 = vdwg.mxu0
    %971 = vrot.lane.b32.xlu0 %v967, 9
    %v972 = vpop.permute.xlu0 %971
    %974 = vst.msk [vmem:[#allocation2 + $0x3] sm:$0x1] %vm408, %v972
    %975 = vrot.lane.b32.xlu0 %v967, 12
    %v976 = vpop.permute.xlu0 %975
    %978 = vst.msk [vmem:[#allocation2 + $0x2] sm:$0x2] %vm413, %v976
    %979 = vrot.lane.b32.xlu0 %v967, 15
    %v980 = vpop.permute.xlu0 %979
    %982 = vst.msk [vmem:[#allocation2 + $0x1] sm:$0x4] %vm418, %v980
    %v983 = vld [vmem:[#allocation2] sm:$0xf]
    %v984 = vld [vmem:[%s5] sm:$0xff]
    %v985 = vld [vmem:[%s5 + $0x8] sm:$0xff]
    %v986 = vld [vmem:[%s5 + $0x10] sm:$0x3]
    %v987 = vld [vmem:[%s6] sm:$0x1]
    %v989 = vlaneseq
    %v990 = vshrl.u32 %v989, 7
    %v991 = vsub.s32 0, %v990
    %v992 = vrot.slane %v987, %v991
    %v995 = vsel %vm120, %v983, 0
    %v998 = vsel %vm235, %v986, 0
    %1000 = vmatprep.subr.mxu0 0.0
    %1001 = vmatpush1.msra.mxu0 %v984
    %1002 = vmatprep.subr.mxu0 0.0
    %1003 = vmatpush1.msra.mxu0 %v985
    %1004 = vmatprep.subr.mxu0 0.0
    %1005 = vmatpush1.msra.mxu0 %v998
    %1006 = vmatprep.subr.mxu0 0.0
    %1007 = vmatpush1.msra.mxu0 0.0
    %1008 = vmatprep.subr.mxu0 0.0
    %1009 = vmatpush1.msra.mxu0 0.0
    %1010 = vmatprep.subr.mxu0 0.0
    %1011 = vmatpush1.msra.mxu0 0.0
    %1012 = vmatprep.subr.mxu0 0.0
    %1013 = vmatpush1.msra.mxu0 0.0
    %1014 = vmatprep.subr.mxu0 0.0
    %1015 = vmatpush1.msra.mxu0 0.0
    %1016 = vmatprep.subr.mxu0 0.0
    %1017 = vmatpush1.msra.mxu0 0.0
    %1018 = vmatprep.subr.mxu0 0.0
    %1019 = vmatpush1.msra.mxu0 0.0
    %1020 = vmatprep.subr.mxu0 0.0
    %1021 = vmatpush1.msra.mxu0 0.0
    %1022 = vmatprep.subr.mxu0 0.0
    %1023 = vmatpush1.msra.mxu0 0.0
    %1024 = vmatprep.subr.mxu0 0.0
    %1025 = vmatpush1.msra.mxu0 0.0
    %1026 = vmatprep.subr.mxu0 0.0
    %1027 = vmatpush1.msra.mxu0 0.0
    %1028 = vmatprep.subr.mxu0 0.0
    %1029 = vmatpush1.msra.mxu0 0.0
    %1030 = vmatprep.subr.mxu0 0.0
    %1031 = vmatpush1.msra.mxu0 0.0
    %1032 = vmatprep.subr.mxu0 0.0
    %1033 = vmatpush1.msra.mxu0 0.0
    %1034 = vmatprep.subr.mxu0 0.0
    %1035 = vmatpush1.msra.mxu0 0.0
    %1036 = vmatprep.subr.mxu0 0.0
    %1037 = vmatpush1.msra.mxu0 0.0
    %1038 = vmatprep.subr.mxu0 0.0
    %1039 = vmatpush1.msra.mxu0 0.0
    %1040 = vmatprep.subr.mxu0 0.0
    %1041 = vmatpush1.msra.mxu0 0.0
    %1042 = vmatprep.subr.mxu0 0.0
    %1043 = vmatpush1.msra.mxu0 0.0
    %1044 = vmatprep.subr.mxu0 0.0
    %1045 = vmatpush1.msra.mxu0 0.0
    %1046 = vmatprep.subr.mxu0 0.0
    %1047 = vmatpush1.msra.mxu0 0.0
    %1048 = vmatprep.subr.mxu0 0.0
    %1049 = vmatpush1.msra.mxu0 0.0
    %1050 = vmatprep.subr.mxu0 0.0
    %1051 = vmatpush1.msra.mxu0 0.0
    %1052 = vmatprep.subr.mxu0 0.0
    %1053 = vmatpush1.msra.mxu0 0.0
    %1054 = vmatprep.subr.mxu0 0.0
    %1055 = vmatpush1.msra.mxu0 0.0
    %1056 = vmatprep.subr.mxu0 0.0
    %1057 = vmatpush1.msra.mxu0 0.0
    %1058 = vmatprep.subr.mxu0 0.0
    %1059 = vmatpush1.msra.mxu0 0.0
    %1060 = vmatprep.subr.mxu0 0.0
    %1061 = vmatpush1.msra.mxu0 0.0
    %1062 = vmatprep.subr.mxu0 0.0
    %1063 = vmatpush1.msra.mxu0 0.0
    %1064 = vmatprep.mubr.f32.mxu0 0.0
    %1065 = vmatmul.mubr.f32.gmra.mrb[0].mxu0 %v995
    %v1066 = vpop.f32.mrb[0].mxu0
    %v1067 = vadd.f32 %v992, %v1066
    %v1068 = vpop.f32.mrb[0].mxu0
    %1069 = vdwg.mxu0
    %v1070 = vmax.f32 %v1067, 0.0
    %v1071 = vld [vmem:[#allocation3] sm:$0xff]
    %v1072 = vld [vmem:[#allocation3 + $0x8] sm:$0xff]
    %v1073 = vld [vmem:[#allocation3 + $0x10] sm:$0xff]
    %v1074 = vld [vmem:[#allocation3 + $0x18] sm:$0xff]
    %v1075 = vld [vmem:[%s8] sm:$0x1]
    %v1077 = vlaneseq
    %v1078 = vshrl.u32 %v1077, 7
    %v1079 = vsub.s32 0, %v1078
    %v1080 = vrot.slane %v1075, %v1079
    %vm1082 = vcmask 261120
    %v1084 = vsel %vm1082, %v1070, 0
    %1086 = vmatprep.subr.mxu0 0.0
    %1087 = vmatpush1.msra.mxu0 %v1071
    %1088 = vmatprep.subr.mxu0 0.0
    %1089 = vmatpush1.msra.mxu0 %v1072
    %1090 = vmatprep.subr.mxu0 0.0
    %1091 = vmatpush1.msra.mxu0 %v1073
    %1092 = vmatprep.subr.mxu0 0.0
    %1093 = vmatpush1.msra.mxu0 %v1074
    %1094 = vmatprep.subr.mxu0 0.0
    %1095 = vmatpush1.msra.mxu0 0.0
    %1096 = vmatprep.subr.mxu0 0.0
    %1097 = vmatpush1.msra.mxu0 0.0
    %1098 = vmatprep.subr.mxu0 0.0
    %1099 = vmatpush1.msra.mxu0 0.0
    %1100 = vmatprep.subr.mxu0 0.0
    %1101 = vmatpush1.msra.mxu0 0.0
    %1102 = vmatprep.subr.mxu0 0.0
    %1103 = vmatpush1.msra.mxu0 0.0
    %1104 = vmatprep.subr.mxu0 0.0
    %1105 = vmatpush1.msra.mxu0 0.0
    %1106 = vmatprep.subr.mxu0 0.0
    %1107 = vmatpush1.msra.mxu0 0.0
    %1108 = vmatprep.subr.mxu0 0.0
    %1109 = vmatpush1.msra.mxu0 0.0
    %1110 = vmatprep.subr.mxu0 0.0
    %1111 = vmatpush1.msra.mxu0 0.0
    %1112 = vmatprep.subr.mxu0 0.0
    %1113 = vmatpush1.msra.mxu0 0.0
    %1114 = vmatprep.subr.mxu0 0.0
    %1115 = vmatpush1.msra.mxu0 0.0
    %1116 = vmatprep.subr.mxu0 0.0
    %1117 = vmatpush1.msra.mxu0 0.0
    %1118 = vmatprep.subr.mxu0 0.0
    %1119 = vmatpush1.msra.mxu0 0.0
    %1120 = vmatprep.subr.mxu0 0.0
    %1121 = vmatpush1.msra.mxu0 0.0
    %1122 = vmatprep.subr.mxu0 0.0
    %1123 = vmatpush1.msra.mxu0 0.0
    %1124 = vmatprep.subr.mxu0 0.0
    %1125 = vmatpush1.msra.mxu0 0.0
    %1126 = vmatprep.subr.mxu0 0.0
    %1127 = vmatpush1.msra.mxu0 0.0
    %1128 = vmatprep.subr.mxu0 0.0
    %1129 = vmatpush1.msra.mxu0 0.0
    %1130 = vmatprep.subr.mxu0 0.0
    %1131 = vmatpush1.msra.mxu0 0.0
    %1132 = vmatprep.subr.mxu0 0.0
    %1133 = vmatpush1.msra.mxu0 0.0
    %1134 = vmatprep.subr.mxu0 0.0
    %1135 = vmatpush1.msra.mxu0 0.0
    %1136 = vmatprep.subr.mxu0 0.0
    %1137 = vmatpush1.msra.mxu0 0.0
    %1138 = vmatprep.subr.mxu0 0.0
    %1139 = vmatpush1.msra.mxu0 0.0
    %1140 = vmatprep.subr.mxu0 0.0
    %1141 = vmatpush1.msra.mxu0 0.0
    %1142 = vmatprep.subr.mxu0 0.0
    %1143 = vmatpush1.msra.mxu0 0.0
    %1144 = vmatprep.subr.mxu0 0.0
    %1145 = vmatpush1.msra.mxu0 0.0
    %1146 = vmatprep.subr.mxu0 0.0
    %1147 = vmatpush1.msra.mxu0 0.0
    %1148 = vmatprep.subr.mxu0 0.0
    %1149 = vmatpush1.msra.mxu0 0.0
    %1150 = vmatprep.mubr.f32.mxu0 0.0
    %1151 = vmatmul.mubr.f32.gmra.mrb[0].mxu0 %v1084
    %v1152 = vpop.f32.mrb[0].mxu0
    %v1153 = vadd.f32 %v1080, %v1152
    %v1154 = vpop.f32.mrb[0].mxu0
    %1155 = vdwg.mxu0
    %v1156 = vmax.f32 %v1153, 0.0
    %s1157 = scalar_lea.vmem [#allocation3], 32
    %v1158 = vld [vmem:[%s1157] sm:$0xff]
    %v1159 = vld [vmem:[%s1157 + $0x8] sm:$0xff]
    %v1160 = vld [vmem:[%s1157 + $0x10] sm:$0xff]
    %v1161 = vld [vmem:[%s1157 + $0x18] sm:$0xff]
    %s1162 = scalar_lea.vmem %s8, 1
    %v1163 = vld [vmem:[%s1162] sm:$0x1]
    %v1165 = vlaneseq
    %v1166 = vshrl.u32 %v1165, 7
    %v1167 = vsub.s32 0, %v1166
    %v1168 = vrot.slane %v1163, %v1167
    %v1171 = vsel %vm1082, %v1156, 0
    %1173 = vmatprep.subr.mxu0 0.0
    %1174 = vmatpush1.msra.mxu0 %v1158
    %1175 = vmatprep.subr.mxu0 0.0
    %1176 = vmatpush1.msra.mxu0 %v1159
    %1177 = vmatprep.subr.mxu0 0.0
    %1178 = vmatpush1.msra.mxu0 %v1160
    %1179 = vmatprep.subr.mxu0 0.0
    %1180 = vmatpush1.msra.mxu0 %v1161
    %1181 = vmatprep.subr.mxu0 0.0
    %1182 = vmatpush1.msra.mxu0 0.0
    %1183 = vmatprep.subr.mxu0 0.0
    %1184 = vmatpush1.msra.mxu0 0.0
    %1185 = vmatprep.subr.mxu0 0.0
    %1186 = vmatpush1.msra.mxu0 0.0
    %1187 = vmatprep.subr.mxu0 0.0
    %1188 = vmatpush1.msra.mxu0 0.0
    %1189 = vmatprep.subr.mxu0 0.0
    %1190 = vmatpush1.msra.mxu0 0.0
    %1191 = vmatprep.subr.mxu0 0.0
    %1192 = vmatpush1.msra.mxu0 0.0
    %1193 = vmatprep.subr.mxu0 0.0
    %1194 = vmatpush1.msra.mxu0 0.0
    %1195 = vmatprep.subr.mxu0 0.0
    %1196 = vmatpush1.msra.mxu0 0.0
    %1197 = vmatprep.subr.mxu0 0.0
    %1198 = vmatpush1.msra.mxu0 0.0
    %1199 = vmatprep.subr.mxu0 0.0
    %1200 = vmatpush1.msra.mxu0 0.0
    %1201 = vmatprep.subr.mxu0 0.0
    %1202 = vmatpush1.msra.mxu0 0.0
    %1203 = vmatprep.subr.mxu0 0.0
    %1204 = vmatpush1.msra.mxu0 0.0
    %1205 = vmatprep.subr.mxu0 0.0
    %1206 = vmatpush1.msra.mxu0 0.0
    %1207 = vmatprep.subr.mxu0 0.0
    %1208 = vmatpush1.msra.mxu0 0.0
    %1209 = vmatprep.subr.mxu0 0.0
    %1210 = vmatpush1.msra.mxu0 0.0
    %1211 = vmatprep.subr.mxu0 0.0
    %1212 = vmatpush1.msra.mxu0 0.0
    %1213 = vmatprep.subr.mxu0 0.0
    %1214 = vmatpush1.msra.mxu0 0.0
    %1215 = vmatprep.subr.mxu0 0.0
    %1216 = vmatpush1.msra.mxu0 0.0
    %1217 = vmatprep.subr.mxu0 0.0
    %1218 = vmatpush1.msra.mxu0 0.0
    %1219 = vmatprep.subr.mxu0 0.0
    %1220 = vmatpush1.msra.mxu0 0.0
    %1221 = vmatprep.subr.mxu0 0.0
    %1222 = vmatpush1.msra.mxu0 0.0
    %1223 = vmatprep.subr.mxu0 0.0
    %1224 = vmatpush1.msra.mxu0 0.0
    %1225 = vmatprep.subr.mxu0 0.0
    %1226 = vmatpush1.msra.mxu0 0.0
    %1227 = vmatprep.subr.mxu0 0.0
    %1228 = vmatpush1.msra.mxu0 0.0
    %1229 = vmatprep.subr.mxu0 0.0
    %1230 = vmatpush1.msra.mxu0 0.0
    %1231 = vmatprep.subr.mxu0 0.0
    %1232 = vmatpush1.msra.mxu0 0.0
    %1233 = vmatprep.subr.mxu0 0.0
    %1234 = vmatpush1.msra.mxu0 0.0
    %1235 = vmatprep.subr.mxu0 0.0
    %1236 = vmatpush1.msra.mxu0 0.0
    %1237 = vmatprep.mubr.f32.mxu0 0.0
    %1238 = vmatmul.mubr.f32.gmra.mrb[0].mxu0 %v1171
    %v1239 = vpop.f32.mrb[0].mxu0
    %v1240 = vadd.f32 %v1168, %v1239
    %v1241 = vpop.f32.mrb[0].mxu0
    %1242 = vdwg.mxu0
    %v1243 = vmax.f32 %v1240, 0.0
    %s1244 = scalar_lea.vmem [#allocation3], 64
    %v1245 = vld [vmem:[%s1244] sm:$0xff]
    %v1246 = vld [vmem:[%s1244 + $0x8] sm:$0xff]
    %v1247 = vld [vmem:[%s1244 + $0x10] sm:$0xff]
    %v1248 = vld [vmem:[%s1244 + $0x18] sm:$0xff]
    %s1249 = scalar_lea.vmem %s8, 2
    %v1250 = vld [vmem:[%s1249] sm:$0x1]
    %v1252 = vlaneseq
    %v1253 = vshrl.u32 %v1252, 7
    %v1254 = vsub.s32 0, %v1253
    %v1255 = vrot.slane %v1250, %v1254
    %v1258 = vsel %vm1082, %v1243, 0
    %1260 = vmatprep.subr.mxu0 0.0
    %1261 = vmatpush1.msra.mxu0 %v1245
    %1262 = vmatprep.subr.mxu0 0.0
    %1263 = vmatpush1.msra.mxu0 %v1246
    %1264 = vmatprep.subr.mxu0 0.0
    %1265 = vmatpush1.msra.mxu0 %v1247
    %1266 = vmatprep.subr.mxu0 0.0
    %1267 = vmatpush1.msra.mxu0 %v1248
    %1268 = vmatprep.subr.mxu0 0.0
    %1269 = vmatpush1.msra.mxu0 0.0
    %1270 = vmatprep.subr.mxu0 0.0
    %1271 = vmatpush1.msra.mxu0 0.0
    %1272 = vmatprep.subr.mxu0 0.0
    %1273 = vmatpush1.msra.mxu0 0.0
    %1274 = vmatprep.subr.mxu0 0.0
    %1275 = vmatpush1.msra.mxu0 0.0
    %1276 = vmatprep.subr.mxu0 0.0
    %1277 = vmatpush1.msra.mxu0 0.0
    %1278 = vmatprep.subr.mxu0 0.0
    %1279 = vmatpush1.msra.mxu0 0.0
    %1280 = vmatprep.subr.mxu0 0.0
    %1281 = vmatpush1.msra.mxu0 0.0
    %1282 = vmatprep.subr.mxu0 0.0
    %1283 = vmatpush1.msra.mxu0 0.0
    %1284 = vmatprep.subr.mxu0 0.0
    %1285 = vmatpush1.msra.mxu0 0.0
    %1286 = vmatprep.subr.mxu0 0.0
    %1287 = vmatpush1.msra.mxu0 0.0
    %1288 = vmatprep.subr.mxu0 0.0
    %1289 = vmatpush1.msra.mxu0 0.0
    %1290 = vmatprep.subr.mxu0 0.0
    %1291 = vmatpush1.msra.mxu0 0.0
    %1292 = vmatprep.subr.mxu0 0.0
    %1293 = vmatpush1.msra.mxu0 0.0
    %1294 = vmatprep.subr.mxu0 0.0
    %1295 = vmatpush1.msra.mxu0 0.0
    %1296 = vmatprep.subr.mxu0 0.0
    %1297 = vmatpush1.msra.mxu0 0.0
    %1298 = vmatprep.subr.mxu0 0.0
    %1299 = vmatpush1.msra.mxu0 0.0
    %1300 = vmatprep.subr.mxu0 0.0
    %1301 = vmatpush1.msra.mxu0 0.0
    %1302 = vmatprep.subr.mxu0 0.0
    %1303 = vmatpush1.msra.mxu0 0.0
    %1304 = vmatprep.subr.mxu0 0.0
    %1305 = vmatpush1.msra.mxu0 0.0
    %1306 = vmatprep.subr.mxu0 0.0
    %1307 = vmatpush1.msra.mxu0 0.0
    %1308 = vmatprep.subr.mxu0 0.0
    %1309 = vmatpush1.msra.mxu0 0.0
    %1310 = vmatprep.subr.mxu0 0.0
    %1311 = vmatpush1.msra.mxu0 0.0
    %1312 = vmatprep.subr.mxu0 0.0
    %1313 = vmatpush1.msra.mxu0 0.0
    %1314 = vmatprep.subr.mxu0 0.0
    %1315 = vmatpush1.msra.mxu0 0.0
    %1316 = vmatprep.subr.mxu0 0.0
    %1317 = vmatpush1.msra.mxu0 0.0
    %1318 = vmatprep.subr.mxu0 0.0
    %1319 = vmatpush1.msra.mxu0 0.0
    %1320 = vmatprep.subr.mxu0 0.0
    %1321 = vmatpush1.msra.mxu0 0.0
    %1322 = vmatprep.subr.mxu0 0.0
    %1323 = vmatpush1.msra.mxu0 0.0
    %1324 = vmatprep.mubr.f32.mxu0 0.0
    %1325 = vmatmul.mubr.f32.gmra.mrb[0].mxu0 %v1258
    %v1326 = vpop.f32.mrb[0].mxu0
    %v1327 = vadd.f32 %v1255, %v1326
    %v1328 = vpop.f32.mrb[0].mxu0
    %1329 = vdwg.mxu0
    %v1330 = vmax.f32 %v1327, 0.0
    %s1331 = scalar_lea.vmem [#allocation3], 96
    %v1332 = vld [vmem:[%s1331] sm:$0xff]
    %v1333 = vld [vmem:[%s1331 + $0x8] sm:$0xff]
    %v1334 = vld [vmem:[%s1331 + $0x10] sm:$0xff]
    %v1335 = vld [vmem:[%s1331 + $0x18] sm:$0xff]
    %s1336 = scalar_lea.vmem %s8, 3
    %v1337 = vld [vmem:[%s1336] sm:$0x1]
    %v1339 = vlaneseq
    %v1340 = vshrl.u32 %v1339, 7
    %v1341 = vsub.s32 0, %v1340
    %v1342 = vrot.slane %v1337, %v1341
    %v1345 = vsel %vm1082, %v1330, 0
    %1347 = vmatprep.subr.mxu0 0.0
    %1348 = vmatpush1.msra.mxu0 %v1332
    %1349 = vmatprep.subr.mxu0 0.0
    %1350 = vmatpush1.msra.mxu0 %v1333
    %1351 = vmatprep.subr.mxu0 0.0
    %1352 = vmatpush1.msra.mxu0 %v1334
    %1353 = vmatprep.subr.mxu0 0.0
    %1354 = vmatpush1.msra.mxu0 %v1335
    %1355 = vmatprep.subr.mxu0 0.0
    %1356 = vmatpush1.msra.mxu0 0.0
    %1357 = vmatprep.subr.mxu0 0.0
    %1358 = vmatpush1.msra.mxu0 0.0
    %1359 = vmatprep.subr.mxu0 0.0
    %1360 = vmatpush1.msra.mxu0 0.0
    %1361 = vmatprep.subr.mxu0 0.0
    %1362 = vmatpush1.msra.mxu0 0.0
    %1363 = vmatprep.subr.mxu0 0.0
    %1364 = vmatpush1.msra.mxu0 0.0
    %1365 = vmatprep.subr.mxu0 0.0
    %1366 = vmatpush1.msra.mxu0 0.0
    %1367 = vmatprep.subr.mxu0 0.0
    %1368 = vmatpush1.msra.mxu0 0.0
    %1369 = vmatprep.subr.mxu0 0.0
    %1370 = vmatpush1.msra.mxu0 0.0
    %1371 = vmatprep.subr.mxu0 0.0
    %1372 = vmatpush1.msra.mxu0 0.0
    %1373 = vmatprep.subr.mxu0 0.0
    %1374 = vmatpush1.msra.mxu0 0.0
    %1375 = vmatprep.subr.mxu0 0.0
    %1376 = vmatpush1.msra.mxu0 0.0
    %1377 = vmatprep.subr.mxu0 0.0
    %1378 = vmatpush1.msra.mxu0 0.0
    %1379 = vmatprep.subr.mxu0 0.0
    %1380 = vmatpush1.msra.mxu0 0.0
    %1381 = vmatprep.subr.mxu0 0.0
    %1382 = vmatpush1.msra.mxu0 0.0
    %1383 = vmatprep.subr.mxu0 0.0
    %1384 = vmatpush1.msra.mxu0 0.0
    %1385 = vmatprep.subr.mxu0 0.0
    %1386 = vmatpush1.msra.mxu0 0.0
    %1387 = vmatprep.subr.mxu0 0.0
    %1388 = vmatpush1.msra.mxu0 0.0
    %1389 = vmatprep.subr.mxu0 0.0
    %1390 = vmatpush1.msra.mxu0 0.0
    %1391 = vmatprep.subr.mxu0 0.0
    %1392 = vmatpush1.msra.mxu0 0.0
    %1393 = vmatprep.subr.mxu0 0.0
    %1394 = vmatpush1.msra.mxu0 0.0
    %1395 = vmatprep.subr.mxu0 0.0
    %1396 = vmatpush1.msra.mxu0 0.0
    %1397 = vmatprep.subr.mxu0 0.0
    %1398 = vmatpush1.msra.mxu0 0.0
    %1399 = vmatprep.subr.mxu0 0.0
    %1400 = vmatpush1.msra.mxu0 0.0
    %1401 = vmatprep.subr.mxu0 0.0
    %1402 = vmatpush1.msra.mxu0 0.0
    %1403 = vmatprep.subr.mxu0 0.0
    %1404 = vmatpush1.msra.mxu0 0.0
    %1405 = vmatprep.subr.mxu0 0.0
    %1406 = vmatpush1.msra.mxu0 0.0
    %1407 = vmatprep.subr.mxu0 0.0
    %1408 = vmatpush1.msra.mxu0 0.0
    %1409 = vmatprep.subr.mxu0 0.0
    %1410 = vmatpush1.msra.mxu0 0.0
    %1411 = vmatprep.mubr.f32.mxu0 0.0
    %1412 = vmatmul.mubr.f32.gmra.mrb[0].mxu0 %v1345
    %v1413 = vpop.f32.mrb[0].mxu0
    %v1414 = vadd.f32 %v1342, %v1413
    %v1415 = vpop.f32.mrb[0].mxu0
    %1416 = vdwg.mxu0
    %v1417 = vmax.f32 %v1414, 0.0
    %s1418 = scalar_lea.vmem [#allocation3], 128
    %v1419 = vld [vmem:[%s1418] sm:$0xff]
    %v1420 = vld [vmem:[%s1418 + $0x8] sm:$0xff]
    %v1421 = vld [vmem:[%s1418 + $0x10] sm:$0xff]
    %v1422 = vld [vmem:[%s1418 + $0x18] sm:$0xff]
    %s1423 = scalar_lea.vmem %s8, 4
    %v1424 = vld [vmem:[%s1423] sm:$0x1]
    %v1426 = vlaneseq
    %v1427 = vshrl.u32 %v1426, 7
    %v1428 = vsub.s32 0, %v1427
    %v1429 = vrot.slane %v1424, %v1428
    %v1432 = vsel %vm1082, %v1417, 0
    %1434 = vmatprep.subr.mxu0 0.0
    %1435 = vmatpush1.msra.mxu0 %v1419
    %1436 = vmatprep.subr.mxu0 0.0
    %1437 = vmatpush1.msra.mxu0 %v1420
    %1438 = vmatprep.subr.mxu0 0.0
    %1439 = vmatpush1.msra.mxu0 %v1421
    %1440 = vmatprep.subr.mxu0 0.0
    %1441 = vmatpush1.msra.mxu0 %v1422
    %1442 = vmatprep.subr.mxu0 0.0
    %1443 = vmatpush1.msra.mxu0 0.0
    %1444 = vmatprep.subr.mxu0 0.0
    %1445 = vmatpush1.msra.mxu0 0.0
    %1446 = vmatprep.subr.mxu0 0.0
    %1447 = vmatpush1.msra.mxu0 0.0
    %1448 = vmatprep.subr.mxu0 0.0
    %1449 = vmatpush1.msra.mxu0 0.0
    %1450 = vmatprep.subr.mxu0 0.0
    %1451 = vmatpush1.msra.mxu0 0.0
    %1452 = vmatprep.subr.mxu0 0.0
    %1453 = vmatpush1.msra.mxu0 0.0
    %1454 = vmatprep.subr.mxu0 0.0
    %1455 = vmatpush1.msra.mxu0 0.0
    %1456 = vmatprep.subr.mxu0 0.0
    %1457 = vmatpush1.msra.mxu0 0.0
    %1458 = vmatprep.subr.mxu0 0.0
    %1459 = vmatpush1.msra.mxu0 0.0
    %1460 = vmatprep.subr.mxu0 0.0
    %1461 = vmatpush1.msra.mxu0 0.0
    %1462 = vmatprep.subr.mxu0 0.0
    %1463 = vmatpush1.msra.mxu0 0.0
    %1464 = vmatprep.subr.mxu0 0.0
    %1465 = vmatpush1.msra.mxu0 0.0
    %1466 = vmatprep.subr.mxu0 0.0
    %1467 = vmatpush1.msra.mxu0 0.0
    %1468 = vmatprep.subr.mxu0 0.0
    %1469 = vmatpush1.msra.mxu0 0.0
    %1470 = vmatprep.subr.mxu0 0.0
    %1471 = vmatpush1.msra.mxu0 0.0
    %1472 = vmatprep.subr.mxu0 0.0
    %1473 = vmatpush1.msra.mxu0 0.0
    %1474 = vmatprep.subr.mxu0 0.0
    %1475 = vmatpush1.msra.mxu0 0.0
    %1476 = vmatprep.subr.mxu0 0.0
    %1477 = vmatpush1.msra.mxu0 0.0
    %1478 = vmatprep.subr.mxu0 0.0
    %1479 = vmatpush1.msra.mxu0 0.0
    %1480 = vmatprep.subr.mxu0 0.0
    %1481 = vmatpush1.msra.mxu0 0.0
    %1482 = vmatprep.subr.mxu0 0.0
    %1483 = vmatpush1.msra.mxu0 0.0
    %1484 = vmatprep.subr.mxu0 0.0
    %1485 = vmatpush1.msra.mxu0 0.0
    %1486 = vmatprep.subr.mxu0 0.0
    %1487 = vmatpush1.msra.mxu0 0.0
    %1488 = vmatprep.subr.mxu0 0.0
    %1489 = vmatpush1.msra.mxu0 0.0
    %1490 = vmatprep.subr.mxu0 0.0
    %1491 = vmatpush1.msra.mxu0 0.0
    %1492 = vmatprep.subr.mxu0 0.0
    %1493 = vmatpush1.msra.mxu0 0.0
    %1494 = vmatprep.subr.mxu0 0.0
    %1495 = vmatpush1.msra.mxu0 0.0
    %1496 = vmatprep.subr.mxu0 0.0
    %1497 = vmatpush1.msra.mxu0 0.0
    %1498 = vmatprep.mubr.f32.mxu0 0.0
    %1499 = vmatmul.mubr.f32.gmra.mrb[0].mxu0 %v1432
    %v1500 = vpop.f32.mrb[0].mxu0
    %v1501 = vadd.f32 %v1429, %v1500
    %v1502 = vpop.f32.mrb[0].mxu0
    %1503 = vdwg.mxu0
    %v1504 = vmax.f32 %v1501, 0.0
    %s1505 = scalar_lea.vmem [#allocation3], 160
    %v1506 = vld [vmem:[%s1505] sm:$0xff]
    %v1507 = vld [vmem:[%s1505 + $0x8] sm:$0xff]
    %v1508 = vld [vmem:[%s1505 + $0x10] sm:$0xff]
    %v1509 = vld [vmem:[%s1505 + $0x18] sm:$0xff]
    %s1510 = scalar_lea.vmem %s8, 5
    %v1511 = vld [vmem:[%s1510] sm:$0x1]
    %v1513 = vlaneseq
    %v1514 = vshrl.u32 %v1513, 7
    %v1515 = vsub.s32 0, %v1514
    %v1516 = vrot.slane %v1511, %v1515
    %v1519 = vsel %vm1082, %v1504, 0
    %1521 = vmatprep.subr.mxu0 0.0
    %1522 = vmatpush1.msra.mxu0 %v1506
    %1523 = vmatprep.subr.mxu0 0.0
    %1524 = vmatpush1.msra.mxu0 %v1507
    %1525 = vmatprep.subr.mxu0 0.0
    %1526 = vmatpush1.msra.mxu0 %v1508
    %1527 = vmatprep.subr.mxu0 0.0
    %1528 = vmatpush1.msra.mxu0 %v1509
    %1529 = vmatprep.subr.mxu0 0.0
    %1530 = vmatpush1.msra.mxu0 0.0
    %1531 = vmatprep.subr.mxu0 0.0
    %1532 = vmatpush1.msra.mxu0 0.0
    %1533 = vmatprep.subr.mxu0 0.0
    %1534 = vmatpush1.msra.mxu0 0.0
    %1535 = vmatprep.subr.mxu0 0.0
    %1536 = vmatpush1.msra.mxu0 0.0
    %1537 = vmatprep.subr.mxu0 0.0
    %1538 = vmatpush1.msra.mxu0 0.0
    %1539 = vmatprep.subr.mxu0 0.0
    %1540 = vmatpush1.msra.mxu0 0.0
    %1541 = vmatprep.subr.mxu0 0.0
    %1542 = vmatpush1.msra.mxu0 0.0
    %1543 = vmatprep.subr.mxu0 0.0
    %1544 = vmatpush1.msra.mxu0 0.0
    %1545 = vmatprep.subr.mxu0 0.0
    %1546 = vmatpush1.msra.mxu0 0.0
    %1547 = vmatprep.subr.mxu0 0.0
    %1548 = vmatpush1.msra.mxu0 0.0
    %1549 = vmatprep.subr.mxu0 0.0
    %1550 = vmatpush1.msra.mxu0 0.0
    %1551 = vmatprep.subr.mxu0 0.0
    %1552 = vmatpush1.msra.mxu0 0.0
    %1553 = vmatprep.subr.mxu0 0.0
    %1554 = vmatpush1.msra.mxu0 0.0
    %1555 = vmatprep.subr.mxu0 0.0
    %1556 = vmatpush1.msra.mxu0 0.0
    %1557 = vmatprep.subr.mxu0 0.0
    %1558 = vmatpush1.msra.mxu0 0.0
    %1559 = vmatprep.subr.mxu0 0.0
    %1560 = vmatpush1.msra.mxu0 0.0
    %1561 = vmatprep.subr.mxu0 0.0
    %1562 = vmatpush1.msra.mxu0 0.0
    %1563 = vmatprep.subr.mxu0 0.0
    %1564 = vmatpush1.msra.mxu0 0.0
    %1565 = vmatprep.subr.mxu0 0.0
    %1566 = vmatpush1.msra.mxu0 0.0
    %1567 = vmatprep.subr.mxu0 0.0
    %1568 = vmatpush1.msra.mxu0 0.0
    %1569 = vmatprep.subr.mxu0 0.0
    %1570 = vmatpush1.msra.mxu0 0.0
    %1571 = vmatprep.subr.mxu0 0.0
    %1572 = vmatpush1.msra.mxu0 0.0
    %1573 = vmatprep.subr.mxu0 0.0
    %1574 = vmatpush1.msra.mxu0 0.0
    %1575 = vmatprep.subr.mxu0 0.0
    %1576 = vmatpush1.msra.mxu0 0.0
    %1577 = vmatprep.subr.mxu0 0.0
    %1578 = vmatpush1.msra.mxu0 0.0
    %1579 = vmatprep.subr.mxu0 0.0
    %1580 = vmatpush1.msra.mxu0 0.0
    %1581 = vmatprep.subr.mxu0 0.0
    %1582 = vmatpush1.msra.mxu0 0.0
    %1583 = vmatprep.subr.mxu0 0.0
    %1584 = vmatpush1.msra.mxu0 0.0
    %1585 = vmatprep.mubr.f32.mxu0 0.0
    %1586 = vmatmul.mubr.f32.gmra.mrb[0].mxu0 %v1519
    %v1587 = vpop.f32.mrb[0].mxu0
    %v1588 = vadd.f32 %v1516, %v1587
    %v1589 = vpop.f32.mrb[0].mxu0
    %1590 = vdwg.mxu0
    %v1591 = vmax.f32 %v1588, 0.0
    %s1592 = scalar_lea.vmem [#allocation3], 192
    %v1593 = vld [vmem:[%s1592] sm:$0xff]
    %v1594 = vld [vmem:[%s1592 + $0x8] sm:$0xff]
    %v1595 = vld [vmem:[%s1592 + $0x10] sm:$0xff]
    %v1596 = vld [vmem:[%s1592 + $0x18] sm:$0xff]
    %s1597 = scalar_lea.vmem %s8, 6
    %v1598 = vld [vmem:[%s1597] sm:$0x1]
    %v1600 = vlaneseq
    %v1601 = vshrl.u32 %v1600, 7
    %v1602 = vsub.s32 0, %v1601
    %v1603 = vrot.slane %v1598, %v1602
    %v1606 = vsel %vm1082, %v1591, 0
    %1608 = vmatprep.subr.mxu0 0.0
    %1609 = vmatpush1.msra.mxu0 %v1593
    %1610 = vmatprep.subr.mxu0 0.0
    %1611 = vmatpush1.msra.mxu0 %v1594
    %1612 = vmatprep.subr.mxu0 0.0
    %1613 = vmatpush1.msra.mxu0 %v1595
    %1614 = vmatprep.subr.mxu0 0.0
    %1615 = vmatpush1.msra.mxu0 %v1596
    %1616 = vmatprep.subr.mxu0 0.0
    %1617 = vmatpush1.msra.mxu0 0.0
    %1618 = vmatprep.subr.mxu0 0.0
    %1619 = vmatpush1.msra.mxu0 0.0
    %1620 = vmatprep.subr.mxu0 0.0
    %1621 = vmatpush1.msra.mxu0 0.0
    %1622 = vmatprep.subr.mxu0 0.0
    %1623 = vmatpush1.msra.mxu0 0.0
    %1624 = vmatprep.subr.mxu0 0.0
    %1625 = vmatpush1.msra.mxu0 0.0
    %1626 = vmatprep.subr.mxu0 0.0
    %1627 = vmatpush1.msra.mxu0 0.0
    %1628 = vmatprep.subr.mxu0 0.0
    %1629 = vmatpush1.msra.mxu0 0.0
    %1630 = vmatprep.subr.mxu0 0.0
    %1631 = vmatpush1.msra.mxu0 0.0
    %1632 = vmatprep.subr.mxu0 0.0
    %1633 = vmatpush1.msra.mxu0 0.0
    %1634 = vmatprep.subr.mxu0 0.0
    %1635 = vmatpush1.msra.mxu0 0.0
    %1636 = vmatprep.subr.mxu0 0.0
    %1637 = vmatpush1.msra.mxu0 0.0
    %1638 = vmatprep.subr.mxu0 0.0
    %1639 = vmatpush1.msra.mxu0 0.0
    %1640 = vmatprep.subr.mxu0 0.0
    %1641 = vmatpush1.msra.mxu0 0.0
    %1642 = vmatprep.subr.mxu0 0.0
    %1643 = vmatpush1.msra.mxu0 0.0
    %1644 = vmatprep.subr.mxu0 0.0
    %1645 = vmatpush1.msra.mxu0 0.0
    %1646 = vmatprep.subr.mxu0 0.0
    %1647 = vmatpush1.msra.mxu0 0.0
    %1648 = vmatprep.subr.mxu0 0.0
    %1649 = vmatpush1.msra.mxu0 0.0
    %1650 = vmatprep.subr.mxu0 0.0
    %1651 = vmatpush1.msra.mxu0 0.0
    %1652 = vmatprep.subr.mxu0 0.0
    %1653 = vmatpush1.msra.mxu0 0.0
    %1654 = vmatprep.subr.mxu0 0.0
    %1655 = vmatpush1.msra.mxu0 0.0
    %1656 = vmatprep.subr.mxu0 0.0
    %1657 = vmatpush1.msra.mxu0 0.0
    %1658 = vmatprep.subr.mxu0 0.0
    %1659 = vmatpush1.msra.mxu0 0.0
    %1660 = vmatprep.subr.mxu0 0.0
    %1661 = vmatpush1.msra.mxu0 0.0
    %1662 = vmatprep.subr.mxu0 0.0
    %1663 = vmatpush1.msra.mxu0 0.0
    %1664 = vmatprep.subr.mxu0 0.0
    %1665 = vmatpush1.msra.mxu0 0.0
    %1666 = vmatprep.subr.mxu0 0.0
    %1667 = vmatpush1.msra.mxu0 0.0
    %1668 = vmatprep.subr.mxu0 0.0
    %1669 = vmatpush1.msra.mxu0 0.0
    %1670 = vmatprep.subr.mxu0 0.0
    %1671 = vmatpush1.msra.mxu0 0.0
    %1672 = vmatprep.mubr.f32.mxu0 0.0
    %1673 = vmatmul.mubr.f32.gmra.mrb[0].mxu0 %v1606
    %v1674 = vpop.f32.mrb[0].mxu0
    %v1675 = vadd.f32 %v1603, %v1674
    %v1676 = vpop.f32.mrb[0].mxu0
    %1677 = vdwg.mxu0
    %v1678 = vmax.f32 %v1675, 0.0
    %s1679 = scalar_lea.vmem [#allocation3], 224
    %v1680 = vld [vmem:[%s1679] sm:$0xff]
    %v1681 = vld [vmem:[%s1679 + $0x8] sm:$0xff]
    %v1682 = vld [vmem:[%s1679 + $0x10] sm:$0xff]
    %v1683 = vld [vmem:[%s1679 + $0x18] sm:$0xff]
    %s1684 = scalar_lea.vmem %s8, 7
    %v1685 = vld [vmem:[%s1684] sm:$0x1]
    %v1687 = vlaneseq
    %v1688 = vshrl.u32 %v1687, 7
    %v1689 = vsub.s32 0, %v1688
    %v1690 = vrot.slane %v1685, %v1689
    %v1693 = vsel %vm1082, %v1678, 0
    %1695 = vmatprep.subr.mxu0 0.0
    %1696 = vmatpush1.msra.mxu0 %v1680
    %1697 = vmatprep.subr.mxu0 0.0
    %1698 = vmatpush1.msra.mxu0 %v1681
    %1699 = vmatprep.subr.mxu0 0.0
    %1700 = vmatpush1.msra.mxu0 %v1682
    %1701 = vmatprep.subr.mxu0 0.0
    %1702 = vmatpush1.msra.mxu0 %v1683
    %1703 = vmatprep.subr.mxu0 0.0
    %1704 = vmatpush1.msra.mxu0 0.0
    %1705 = vmatprep.subr.mxu0 0.0
    %1706 = vmatpush1.msra.mxu0 0.0
    %1707 = vmatprep.subr.mxu0 0.0
    %1708 = vmatpush1.msra.mxu0 0.0
    %1709 = vmatprep.subr.mxu0 0.0
    %1710 = vmatpush1.msra.mxu0 0.0
    %1711 = vmatprep.subr.mxu0 0.0
    %1712 = vmatpush1.msra.mxu0 0.0
    %1713 = vmatprep.subr.mxu0 0.0
    %1714 = vmatpush1.msra.mxu0 0.0
    %1715 = vmatprep.subr.mxu0 0.0
    %1716 = vmatpush1.msra.mxu0 0.0
    %1717 = vmatprep.subr.mxu0 0.0
    %1718 = vmatpush1.msra.mxu0 0.0
    %1719 = vmatprep.subr.mxu0 0.0
    %1720 = vmatpush1.msra.mxu0 0.0
    %1721 = vmatprep.subr.mxu0 0.0
    %1722 = vmatpush1.msra.mxu0 0.0
    %1723 = vmatprep.subr.mxu0 0.0
    %1724 = vmatpush1.msra.mxu0 0.0
    %1725 = vmatprep.subr.mxu0 0.0
    %1726 = vmatpush1.msra.mxu0 0.0
    %1727 = vmatprep.subr.mxu0 0.0
    %1728 = vmatpush1.msra.mxu0 0.0
    %1729 = vmatprep.subr.mxu0 0.0
    %1730 = vmatpush1.msra.mxu0 0.0
    %1731 = vmatprep.subr.mxu0 0.0
    %1732 = vmatpush1.msra.mxu0 0.0
    %1733 = vmatprep.subr.mxu0 0.0
    %1734 = vmatpush1.msra.mxu0 0.0
    %1735 = vmatprep.subr.mxu0 0.0
    %1736 = vmatpush1.msra.mxu0 0.0
    %1737 = vmatprep.subr.mxu0 0.0
    %1738 = vmatpush1.msra.mxu0 0.0
    %1739 = vmatprep.subr.mxu0 0.0
    %1740 = vmatpush1.msra.mxu0 0.0
    %1741 = vmatprep.subr.mxu0 0.0
    %1742 = vmatpush1.msra.mxu0 0.0
    %1743 = vmatprep.subr.mxu0 0.0
    %1744 = vmatpush1.msra.mxu0 0.0
    %1745 = vmatprep.subr.mxu0 0.0
    %1746 = vmatpush1.msra.mxu0 0.0
    %1747 = vmatprep.subr.mxu0 0.0
    %1748 = vmatpush1.msra.mxu0 0.0
    %1749 = vmatprep.subr.mxu0 0.0
    %1750 = vmatpush1.msra.mxu0 0.0
    %1751 = vmatprep.subr.mxu0 0.0
    %1752 = vmatpush1.msra.mxu0 0.0
    %1753 = vmatprep.subr.mxu0 0.0
    %1754 = vmatpush1.msra.mxu0 0.0
    %1755 = vmatprep.subr.mxu0 0.0
    %1756 = vmatpush1.msra.mxu0 0.0
    %1757 = vmatprep.subr.mxu0 0.0
    %1758 = vmatpush1.msra.mxu0 0.0
    %1759 = vmatprep.mubr.f32.mxu0 0.0
    %1760 = vmatmul.mubr.f32.gmra.mrb[0].mxu0 %v1693
    %v1761 = vpop.f32.mrb[0].mxu0
    %v1762 = vadd.f32 %v1690, %v1761
    %v1763 = vpop.f32.mrb[0].mxu0
    %1764 = vdwg.mxu0
    %v1765 = vmax.f32 %v1762, 0.0
    %v1766 = vld [vmem:[%s9] sm:$0xff]
    %v1767 = vld [vmem:[%s9 + $0x8] sm:$0xff]
    %v1768 = vld [vmem:[%s9 + $0x10] sm:$0xff]
    %v1769 = vld [vmem:[%s9 + $0x18] sm:$0xff]
    %v1770 = vld [vmem:[%s10] sm:$0x1]
    %v1772 = vlaneseq
    %v1773 = vshrl.u32 %v1772, 7
    %v1774 = vsub.s32 0, %v1773
    %v1775 = vrot.slane %v1770, %v1774
    %v1778 = vsel %vm1082, %v1765, 0
    %1780 = vmatprep.subr.mxu0 0.0
    %1781 = vmatpush1.msra.mxu0 %v1766
    %1782 = vmatprep.subr.mxu0 0.0
    %1783 = vmatpush1.msra.mxu0 %v1767
    %1784 = vmatprep.subr.mxu0 0.0
    %1785 = vmatpush1.msra.mxu0 %v1768
    %1786 = vmatprep.subr.mxu0 0.0
    %1787 = vmatpush1.msra.mxu0 %v1769
    %1788 = vmatprep.subr.mxu0 0.0
    %1789 = vmatpush1.msra.mxu0 0.0
    %1790 = vmatprep.subr.mxu0 0.0
    %1791 = vmatpush1.msra.mxu0 0.0
    %1792 = vmatprep.subr.mxu0 0.0
    %1793 = vmatpush1.msra.mxu0 0.0
    %1794 = vmatprep.subr.mxu0 0.0
    %1795 = vmatpush1.msra.mxu0 0.0
    %1796 = vmatprep.subr.mxu0 0.0
    %1797 = vmatpush1.msra.mxu0 0.0
    %1798 = vmatprep.subr.mxu0 0.0
    %1799 = vmatpush1.msra.mxu0 0.0
    %1800 = vmatprep.subr.mxu0 0.0
    %1801 = vmatpush1.msra.mxu0 0.0
    %1802 = vmatprep.subr.mxu0 0.0
    %1803 = vmatpush1.msra.mxu0 0.0
    %1804 = vmatprep.subr.mxu0 0.0
    %1805 = vmatpush1.msra.mxu0 0.0
    %1806 = vmatprep.subr.mxu0 0.0
    %1807 = vmatpush1.msra.mxu0 0.0
    %1808 = vmatprep.subr.mxu0 0.0
    %1809 = vmatpush1.msra.mxu0 0.0
    %1810 = vmatprep.subr.mxu0 0.0
    %1811 = vmatpush1.msra.mxu0 0.0
    %1812 = vmatprep.subr.mxu0 0.0
    %1813 = vmatpush1.msra.mxu0 0.0
    %1814 = vmatprep.subr.mxu0 0.0
    %1815 = vmatpush1.msra.mxu0 0.0
    %1816 = vmatprep.subr.mxu0 0.0
    %1817 = vmatpush1.msra.mxu0 0.0
    %1818 = vmatprep.subr.mxu0 0.0
    %1819 = vmatpush1.msra.mxu0 0.0
    %1820 = vmatprep.subr.mxu0 0.0
    %1821 = vmatpush1.msra.mxu0 0.0
    %1822 = vmatprep.subr.mxu0 0.0
    %1823 = vmatpush1.msra.mxu0 0.0
    %1824 = vmatprep.subr.mxu0 0.0
    %1825 = vmatpush1.msra.mxu0 0.0
    %1826 = vmatprep.subr.mxu0 0.0
    %1827 = vmatpush1.msra.mxu0 0.0
    %1828 = vmatprep.subr.mxu0 0.0
    %1829 = vmatpush1.msra.mxu0 0.0
    %1830 = vmatprep.subr.mxu0 0.0
    %1831 = vmatpush1.msra.mxu0 0.0
    %1832 = vmatprep.subr.mxu0 0.0
    %1833 = vmatpush1.msra.mxu0 0.0
    %1834 = vmatprep.subr.mxu0 0.0
    %1835 = vmatpush1.msra.mxu0 0.0
    %1836 = vmatprep.subr.mxu0 0.0
    %1837 = vmatpush1.msra.mxu0 0.0
    %1838 = vmatprep.subr.mxu0 0.0
    %1839 = vmatpush1.msra.mxu0 0.0
    %1840 = vmatprep.subr.mxu0 0.0
    %1841 = vmatpush1.msra.mxu0 0.0
    %1842 = vmatprep.subr.mxu0 0.0
    %1843 = vmatpush1.msra.mxu0 0.0
    %1844 = vmatprep.mubr.f32.mxu0 0.0
    %1845 = vmatmul.mubr.f32.gmra.mrb[0].mxu0 %v1778
    %v1846 = vpop.f32.mrb[0].mxu0
    %v1847 = vadd.f32 %v1775, %v1846
    %v1848 = vpop.f32.mrb[0].mxu0
    %1849 = vdwg.mxu0
    %vm1850 = vcmask 60416
    %1851 = vst.msk [vmem:[#allocation6] sm:$0xf] %vm1850, %v1847
    // Predicated region
    $region50: #{tpu_custom_call.1} parent=1 // pred_check
      _
    $region51: #{tpu_custom_call.1} parent=1 // pred_check_branch
      %1853 = sbr.rel (0) target = $region53
    $region52: #{tpu_custom_call.1} parent=1 // pred_region
      %s1855 = ssub.s32 64, 64
      %1856 = vsyncadd [#allocation5], %s1855
      %s1858 = sshll.u32 [#allocation6], 4
      %s1859 = int_to_ptr.vmem [resolvable:$true] %s1858
      %1861 = dma.vmem_to_hbm [thread:$0]  %s1859, 64, %s11, [#allocation5]
    $region53: #{tpu_custom_call.1} parent=1 // pred_fallthru
      _
    // Predicated region
    $region54: #{tpu_custom_call.1} parent=1 // pred_check
      _
    $region55: #{tpu_custom_call.1} parent=1 // pred_check_branch
      %1863 = sbr.rel (0) target = $region57
    $region56: #{tpu_custom_call.1} parent=1 // pred_region
      %1864 = dma.done [#allocation5], 64
    $region57: #{tpu_custom_call.1} parent=1 // pred_fallthru
      _
    %1865 = vsyncpa [#allocation4], 1
    %1866 = vsyncpa [#allocation5], 1

</llo_original>
